<compile_context>
chip_gen: v7x
topology: tpu7x:2x2x1
jax: 0.10.0
libtpu: 0.0.40
codegen_flags: <defaults>
</compile_context>

<pallas_src>
import jax
import jax.numpy as jnp
import numpy as np
from jax.experimental import pallas as pl
from jax.experimental.pallas import tpu as pltpu


def _make_fused_rnn_kernel(n_layers, seq_len, batch, hidden_dim):
    T, B, H = seq_len, batch, hidden_dim

    def kernel(x_ref, h0_ref, *args):
        # args = [wih_t_0, whh_t_0, b_0, ..., wih_t_{L-1}, whh_t_{L-1}, b_{L-1},
        #         hN_ref, mean_ref, (prev_ref if n_layers > 1)]
        w_args = args[:3 * n_layers]
        hN_ref = args[3 * n_layers]
        mean_ref = args[3 * n_layers + 1]
        prev_ref = args[3 * n_layers + 2] if n_layers > 1 else None

        acc = jnp.zeros((B, H), jnp.float32)   # deferred mean accumulator
        for l in range(n_layers):
            wih = w_args[3 * l][...]           # (F_l, H)  pre-transposed
            whh = w_args[3 * l + 1][...]       # (H, H)    pre-transposed
            b = w_args[3 * l + 2][...]         # (1, H)    b_ih + b_hh folded
            is_last = (l == n_layers - 1)

            # Hoisted input projection for the whole sequence, time-major
            # rows (row index = t*B + b), bias added once (broadcast hoisted).
            xin = x_ref[...] if l == 0 else prev_ref[...]       # (T*B, F_l)
            xw = jnp.dot(xin, wih, preferred_element_type=jnp.float32) + b

            h = h0_ref[l]                                       # (B, H)
            for t in range(T):      # static unroll: recurrence is serial
                pre = xw[t * B:(t + 1) * B, :] + jnp.dot(
                    h, whh, preferred_element_type=jnp.float32)
                h = jnp.tanh(pre)
                if is_last:
                    acc = acc + h                 # off the critical chain
                else:
                    prev_ref[t * B:(t + 1) * B, :] = h   # stays in VMEM
            hN_ref[l] = h

        mean_ref[0, 0] = jnp.sum(acc) / jnp.float32(T * B * H)

    return kernel


@jax.jit
def test_rnn_forward(prepared_params, x, hidden):
    """x: (B, T, input_size) batch-first, hidden: (n_layers, B, H).
    Returns (mean(rnn_outputs), final_hidden) like the PyTorch module."""
    B, T, F_in = x.shape
    L, _, H = hidden.shape

    # One tiny (2,8,4) relayout so the kernel only ever does contiguous 2-D
    # slices; everything downstream stays time-major inside VMEM.
    x_tm = jnp.transpose(x, (1, 0, 2)).reshape(T * B, F_in)

    flat_w = []
    for (wih_t, whh_t, b) in prepared_params:
        flat_w += [wih_t, whh_t, b]

    vmem = pl.BlockSpec(memory_space=pltpu.MemorySpace.VMEM)
    smem = pl.BlockSpec(memory_space=pltpu.MemorySpace.SMEM)
    scratch = [pltpu.VMEM((T * B, H), jnp.float32)] if L > 1 else []

    hN, mean = pl.pallas_call(
        _make_fused_rnn_kernel(L, T, B, H),
        out_shape=(jax.ShapeDtypeStruct((L, B, H), jnp.float32),
                   jax.ShapeDtypeStruct((1, 1), jnp.float32)),
        in_specs=[vmem] * (2 + 3 * L),
        out_specs=(vmem, smem),
        scratch_shapes=scratch,
    )(x_tm, hidden, *flat_w)
    return mean[0, 0], hN


def init_params(key, input_size, output_size, hidden_dim, n_layers):
    """Deterministic init matching nn.RNN's U(-1/sqrt(H), 1/sqrt(H)) shapes."""
    k = 1.0 / np.sqrt(hidden_dim)
    params = []
    for layer in range(n_layers):
        in_dim = input_size if layer == 0 else hidden_dim
        key, k0, k1, k2, k3 = jax.random.split(key, 5)
        w_ih = jax.random.uniform(k0, (hidden_dim, in_dim), jnp.float32, -k, k)
        w_hh = jax.random.uniform(k1, (hidden_dim, hidden_dim), jnp.float32, -k, k)
        b_ih = jax.random.uniform(k2, (hidden_dim,), jnp.float32, -k, k)
        b_hh = jax.random.uniform(k3, (hidden_dim,), jnp.float32, -k, k)
        params.append((w_ih, w_hh, b_ih, b_hh))
    # self.linear exists in __init__ but is unused by forward; init for parity.
    # TODO(synk): nn.Linear(hidden_dim, output_size) is never applied in forward.
    key, kw, kb = jax.random.split(key, 3)
    _linear_w = jax.random.uniform(kw, (output_size, hidden_dim), jnp.float32, -k, k)
    _linear_b = jax.random.uniform(kb, (output_size,), jnp.float32, -k, k)
    return params, (_linear_w, _linear_b)


def prepare_params(params):
    """One-time fold: W^T and b_ih + b_hh, so the forward path does no glue ops."""
    prepared = []
    for (w_ih, w_hh, b_ih, b_hh) in params:
        prepared.append((jnp.transpose(w_ih),              # (F_in, H)
                         jnp.transpose(w_hh),              # (H, H)
                         (b_ih + b_hh).reshape(1, -1)))    # (1, H)
    return prepared


def ref_forward(params, x, hidden):
    """Pure-JAX reference of the same recurrence (sanity check)."""
    B, T, _ = x.shape
    x_tm = jnp.transpose(x, (1, 0, 2))
    h_finals = []
    for (w_ih, w_hh, b_ih, b_hh), h0 in zip(params, hidden):
        h = h0
        ys = []
        for t in range(T):
            h = jnp.tanh(x_tm[t] @ w_ih.T + b_ih + h @ w_hh.T + b_hh)
            ys.append(h)
        x_tm = jnp.stack(ys)
        h_finals.append(h)
    return jnp.mean(x_tm), jnp.stack(h_finals)


if __name__ == "__main__":
    # Small shapes consistent with the module: batch=2, seq=8, input_size=4,
    # hidden_dim=32, n_layers=2, output_size=4 (linear is unused in forward).
    B, T, input_size, hidden_dim, n_layers, output_size = 2, 8, 4, 32, 2, 4

    key = jax.random.PRNGKey(0)
    key, kx = jax.random.split(key)
    x = jax.random.normal(kx, (B, T, input_size), jnp.float32)

    params, _linear = init_params(key, input_size, output_size, hidden_dim, n_layers)
    prepared = prepare_params(params)
    hidden = jnp.zeros((n_layers, B, hidden_dim), jnp.float32)  # init_hidden()

    mean_out, hidden_out = test_rnn_forward(prepared, x, hidden)
    mean_out = jax.block_until_ready(mean_out)
    hidden_out = jax.block_until_ready(hidden_out)

    mean_ref, hidden_ref = ref_forward(params, x, hidden)
    assert np.allclose(np.asarray(mean_out), np.asarray(mean_ref), atol=1e-3)
    assert np.allclose(np.asarray(hidden_out), np.asarray(hidden_ref), atol=1e-3)
    assert hidden_out.shape == (n_layers, B, hidden_dim)

    print("KERNEL_OK")
</pallas_src>

<mosaic_0001>
module attributes {stable_mosaic.version = 11 : i64} {
  func.func @kernel(%arg0: memref<16x4xf32, #tpu.memory_space<vmem>>, %arg1: memref<2x2x32xf32, #tpu.memory_space<vmem>>, %arg2: memref<4x32xf32, #tpu.memory_space<vmem>>, %arg3: memref<32x32xf32, #tpu.memory_space<vmem>>, %arg4: memref<1x32xf32, #tpu.memory_space<vmem>>, %arg5: memref<32x32xf32, #tpu.memory_space<vmem>>, %arg6: memref<32x32xf32, #tpu.memory_space<vmem>>, %arg7: memref<1x32xf32, #tpu.memory_space<vmem>>, %arg8: memref<2x2x32xf32, #tpu.memory_space<vmem>>, %arg9: memref<1x1xf32, #tpu.memory_space<smem>>, %arg10: memref<16x32xf32, #tpu.memory_space<vmem>>) attributes {dimension_semantics = [], scalar_prefetch = 0 : i64, scratch_operands = 1 : i64, tpu.core_type = #tpu.core_type<tc>} {
    %cst = arith.constant 0.000000e+00 : f32
    %0 = vector.broadcast %cst : f32 to vector<2x32xf32>
    %c0 = arith.constant 0 : index
    %c0_0 = arith.constant 0 : index
    %1 = vector.load %arg2[%c0, %c0_0] : memref<4x32xf32, #tpu.memory_space<vmem>>, vector<4x32xf32>
    %c0_1 = arith.constant 0 : index
    %c0_2 = arith.constant 0 : index
    %2 = vector.load %arg3[%c0_1, %c0_2] : memref<32x32xf32, #tpu.memory_space<vmem>>, vector<32x32xf32>
    %c0_3 = arith.constant 0 : index
    %c0_4 = arith.constant 0 : index
    %3 = vector.load %arg4[%c0_3, %c0_4] : memref<1x32xf32, #tpu.memory_space<vmem>>, vector<1x32xf32>
    %c0_5 = arith.constant 0 : index
    %c0_6 = arith.constant 0 : index
    %4 = vector.load %arg0[%c0_5, %c0_6] : memref<16x4xf32, #tpu.memory_space<vmem>>, vector<16x4xf32>
    %cst_7 = arith.constant dense<0.000000e+00> : vector<16x32xf32>
    %5 = tpu.matmul %4, %1, %cst_7 {dimension_numbers = #tpu.dot_dimension_numbers<[1], [0], [0], [1], [0, 0, 1, 1], [], []>} : vector<16x4xf32>, vector<4x32xf32>, vector<16x32xf32> -> vector<16x32xf32>
    %6 = vector.broadcast %3 : vector<1x32xf32> to vector<16x32xf32>
    %7 = arith.addf %5, %6 : vector<16x32xf32>
    %c0_8 = arith.constant 0 : index
    %c0_9 = arith.constant 0 : index
    %c0_10 = arith.constant 0 : index
    %8 = vector.load %arg1[%c0_8, %c0_9, %c0_10] : memref<2x2x32xf32, #tpu.memory_space<vmem>>, vector<1x2x32xf32>
    %9 = vector.shape_cast %8 : vector<1x2x32xf32> to vector<2x32xf32>
    %10 = vector.extract_strided_slice %7 {offsets = [0, 0], sizes = [2, 32], strides = [1, 1]} : vector<16x32xf32> to vector<2x32xf32>
    %cst_11 = arith.constant dense<0.000000e+00> : vector<2x32xf32>
    %11 = tpu.matmul %9, %2, %cst_11 {dimension_numbers = #tpu.dot_dimension_numbers<[1], [0], [0], [1], [0, 0, 1, 1], [], []>} : vector<2x32xf32>, vector<32x32xf32>, vector<2x32xf32> -> vector<2x32xf32>
    %12 = arith.addf %10, %11 : vector<2x32xf32>
    %13 = math.tanh %12 : vector<2x32xf32>
    %c0_12 = arith.constant 0 : index
    %c0_13 = arith.constant 0 : index
    %14 = vector.load %arg10[%c0_12, %c0_13] : memref<16x32xf32, #tpu.memory_space<vmem>>, vector<2x32xf32>
    tpu.vector_store %arg10[%c0_12, %c0_13], %13 {strides = array<i32>} : memref<16x32xf32, #tpu.memory_space<vmem>>, vector<2x32xf32>,
    %15 = vector.extract_strided_slice %7 {offsets = [2, 0], sizes = [2, 32], strides = [1, 1]} : vector<16x32xf32> to vector<2x32xf32>
    %cst_14 = arith.constant dense<0.000000e+00> : vector<2x32xf32>
    %16 = tpu.matmul %13, %2, %cst_14 {dimension_numbers = #tpu.dot_dimension_numbers<[1], [0], [0], [1], [0, 0, 1, 1], [], []>} : vector<2x32xf32>, vector<32x32xf32>, vector<2x32xf32> -> vector<2x32xf32>
    %17 = arith.addf %15, %16 : vector<2x32xf32>
    %18 = math.tanh %17 : vector<2x32xf32>
    %c2 = arith.constant 2 : index
    %c0_15 = arith.constant 0 : index
    %19 = vector.load %arg10[%c2, %c0_15] : memref<16x32xf32, #tpu.memory_space<vmem>>, vector<2x32xf32>
    tpu.vector_store %arg10[%c2, %c0_15], %18 {strides = array<i32>} : memref<16x32xf32, #tpu.memory_space<vmem>>, vector<2x32xf32>,
    %20 = vector.extract_strided_slice %7 {offsets = [4, 0], sizes = [2, 32], strides = [1, 1]} : vector<16x32xf32> to vector<2x32xf32>
    %cst_16 = arith.constant dense<0.000000e+00> : vector<2x32xf32>
    %21 = tpu.matmul %18, %2, %cst_16 {dimension_numbers = #tpu.dot_dimension_numbers<[1], [0], [0], [1], [0, 0, 1, 1], [], []>} : vector<2x32xf32>, vector<32x32xf32>, vector<2x32xf32> -> vector<2x32xf32>
    %22 = arith.addf %20, %21 : vector<2x32xf32>
    %23 = math.tanh %22 : vector<2x32xf32>
    %c4 = arith.constant 4 : index
    %c0_17 = arith.constant 0 : index
    %24 = vector.load %arg10[%c4, %c0_17] : memref<16x32xf32, #tpu.memory_space<vmem>>, vector<2x32xf32>
    tpu.vector_store %arg10[%c4, %c0_17], %23 {strides = array<i32>} : memref<16x32xf32, #tpu.memory_space<vmem>>, vector<2x32xf32>,
    %25 = vector.extract_strided_slice %7 {offsets = [6, 0], sizes = [2, 32], strides = [1, 1]} : vector<16x32xf32> to vector<2x32xf32>
    %cst_18 = arith.constant dense<0.000000e+00> : vector<2x32xf32>
    %26 = tpu.matmul %23, %2, %cst_18 {dimension_numbers = #tpu.dot_dimension_numbers<[1], [0], [0], [1], [0, 0, 1, 1], [], []>} : vector<2x32xf32>, vector<32x32xf32>, vector<2x32xf32> -> vector<2x32xf32>
    %27 = arith.addf %25, %26 : vector<2x32xf32>
    %28 = math.tanh %27 : vector<2x32xf32>
    %c6 = arith.constant 6 : index
    %c0_19 = arith.constant 0 : index
    %29 = vector.load %arg10[%c6, %c0_19] : memref<16x32xf32, #tpu.memory_space<vmem>>, vector<2x32xf32>
    tpu.vector_store %arg10[%c6, %c0_19], %28 {strides = array<i32>} : memref<16x32xf32, #tpu.memory_space<vmem>>, vector<2x32xf32>,
    %30 = vector.extract_strided_slice %7 {offsets = [8, 0], sizes = [2, 32], strides = [1, 1]} : vector<16x32xf32> to vector<2x32xf32>
    %cst_20 = arith.constant dense<0.000000e+00> : vector<2x32xf32>
    %31 = tpu.matmul %28, %2, %cst_20 {dimension_numbers = #tpu.dot_dimension_numbers<[1], [0], [0], [1], [0, 0, 1, 1], [], []>} : vector<2x32xf32>, vector<32x32xf32>, vector<2x32xf32> -> vector<2x32xf32>
    %32 = arith.addf %30, %31 : vector<2x32xf32>
    %33 = math.tanh %32 : vector<2x32xf32>
    %c8 = arith.constant 8 : index
    %c0_21 = arith.constant 0 : index
    %34 = vector.load %arg10[%c8, %c0_21] : memref<16x32xf32, #tpu.memory_space<vmem>>, vector<2x32xf32>
    tpu.vector_store %arg10[%c8, %c0_21], %33 {strides = array<i32>} : memref<16x32xf32, #tpu.memory_space<vmem>>, vector<2x32xf32>,
    %35 = vector.extract_strided_slice %7 {offsets = [10, 0], sizes = [2, 32], strides = [1, 1]} : vector<16x32xf32> to vector<2x32xf32>
    %cst_22 = arith.constant dense<0.000000e+00> : vector<2x32xf32>
    %36 = tpu.matmul %33, %2, %cst_22 {dimension_numbers = #tpu.dot_dimension_numbers<[1], [0], [0], [1], [0, 0, 1, 1], [], []>} : vector<2x32xf32>, vector<32x32xf32>, vector<2x32xf32> -> vector<2x32xf32>
    %37 = arith.addf %35, %36 : vector<2x32xf32>
    %38 = math.tanh %37 : vector<2x32xf32>
    %c10 = arith.constant 10 : index
    %c0_23 = arith.constant 0 : index
    %39 = vector.load %arg10[%c10, %c0_23] : memref<16x32xf32, #tpu.memory_space<vmem>>, vector<2x32xf32>
    tpu.vector_store %arg10[%c10, %c0_23], %38 {strides = array<i32>} : memref<16x32xf32, #tpu.memory_space<vmem>>, vector<2x32xf32>,
    %40 = vector.extract_strided_slice %7 {offsets = [12, 0], sizes = [2, 32], strides = [1, 1]} : vector<16x32xf32> to vector<2x32xf32>
    %cst_24 = arith.constant dense<0.000000e+00> : vector<2x32xf32>
    %41 = tpu.matmul %38, %2, %cst_24 {dimension_numbers = #tpu.dot_dimension_numbers<[1], [0], [0], [1], [0, 0, 1, 1], [], []>} : vector<2x32xf32>, vector<32x32xf32>, vector<2x32xf32> -> vector<2x32xf32>
    %42 = arith.addf %40, %41 : vector<2x32xf32>
    %43 = math.tanh %42 : vector<2x32xf32>
    %c12 = arith.constant 12 : index
    %c0_25 = arith.constant 0 : index
    %44 = vector.load %arg10[%c12, %c0_25] : memref<16x32xf32, #tpu.memory_space<vmem>>, vector<2x32xf32>
    tpu.vector_store %arg10[%c12, %c0_25], %43 {strides = array<i32>} : memref<16x32xf32, #tpu.memory_space<vmem>>, vector<2x32xf32>,
    %45 = vector.extract_strided_slice %7 {offsets = [14, 0], sizes = [2, 32], strides = [1, 1]} : vector<16x32xf32> to vector<2x32xf32>
    %cst_26 = arith.constant dense<0.000000e+00> : vector<2x32xf32>
    %46 = tpu.matmul %43, %2, %cst_26 {dimension_numbers = #tpu.dot_dimension_numbers<[1], [0], [0], [1], [0, 0, 1, 1], [], []>} : vector<2x32xf32>, vector<32x32xf32>, vector<2x32xf32> -> vector<2x32xf32>
    %47 = arith.addf %45, %46 : vector<2x32xf32>
    %48 = math.tanh %47 : vector<2x32xf32>
    %c14 = arith.constant 14 : index
    %c0_27 = arith.constant 0 : index
    %49 = vector.load %arg10[%c14, %c0_27] : memref<16x32xf32, #tpu.memory_space<vmem>>, vector<2x32xf32>
    tpu.vector_store %arg10[%c14, %c0_27], %48 {strides = array<i32>} : memref<16x32xf32, #tpu.memory_space<vmem>>, vector<2x32xf32>,
    %c0_28 = arith.constant 0 : index
    %c0_29 = arith.constant 0 : index
    %c0_30 = arith.constant 0 : index
    %50 = vector.load %arg8[%c0_28, %c0_29, %c0_30] : memref<2x2x32xf32, #tpu.memory_space<vmem>>, vector<1x2x32xf32>
    %51 = vector.shape_cast %50 : vector<1x2x32xf32> to vector<2x32xf32>
    %52 = vector.shape_cast %48 : vector<2x32xf32> to vector<1x2x32xf32>
    tpu.vector_store %arg8[%c0_28, %c0_29, %c0_30], %52 {strides = array<i32>} : memref<2x2x32xf32, #tpu.memory_space<vmem>>, vector<1x2x32xf32>,
    %c0_31 = arith.constant 0 : index
    %c0_32 = arith.constant 0 : index
    %53 = vector.load %arg5[%c0_31, %c0_32] : memref<32x32xf32, #tpu.memory_space<vmem>>, vector<32x32xf32>
    %c0_33 = arith.constant 0 : index
    %c0_34 = arith.constant 0 : index
    %54 = vector.load %arg6[%c0_33, %c0_34] : memref<32x32xf32, #tpu.memory_space<vmem>>, vector<32x32xf32>
    %c0_35 = arith.constant 0 : index
    %c0_36 = arith.constant 0 : index
    %55 = vector.load %arg7[%c0_35, %c0_36] : memref<1x32xf32, #tpu.memory_space<vmem>>, vector<1x32xf32>
    %c0_37 = arith.constant 0 : index
    %c0_38 = arith.constant 0 : index
    %56 = vector.load %arg10[%c0_37, %c0_38] : memref<16x32xf32, #tpu.memory_space<vmem>>, vector<16x32xf32>
    %cst_39 = arith.constant dense<0.000000e+00> : vector<16x32xf32>
    %57 = tpu.matmul %56, %53, %cst_39 {dimension_numbers = #tpu.dot_dimension_numbers<[1], [0], [0], [1], [0, 0, 1, 1], [], []>} : vector<16x32xf32>, vector<32x32xf32>, vector<16x32xf32> -> vector<16x32xf32>
    %58 = vector.broadcast %55 : vector<1x32xf32> to vector<16x32xf32>
    %59 = arith.addf %57, %58 : vector<16x32xf32>
    %c1 = arith.constant 1 : index
    %c0_40 = arith.constant 0 : index
    %c0_41 = arith.constant 0 : index
    %60 = vector.load %arg1[%c1, %c0_40, %c0_41] : memref<2x2x32xf32, #tpu.memory_space<vmem>>, vector<1x2x32xf32>
    %61 = vector.shape_cast %60 : vector<1x2x32xf32> to vector<2x32xf32>
    %62 = vector.extract_strided_slice %59 {offsets = [0, 0], sizes = [2, 32], strides = [1, 1]} : vector<16x32xf32> to vector<2x32xf32>
    %cst_42 = arith.constant dense<0.000000e+00> : vector<2x32xf32>
    %63 = tpu.matmul %61, %54, %cst_42 {dimension_numbers = #tpu.dot_dimension_numbers<[1], [0], [0], [1], [0, 0, 1, 1], [], []>} : vector<2x32xf32>, vector<32x32xf32>, vector<2x32xf32> -> vector<2x32xf32>
    %64 = arith.addf %62, %63 : vector<2x32xf32>
    %65 = math.tanh %64 : vector<2x32xf32>
    %66 = arith.addf %0, %65 : vector<2x32xf32>
    %67 = vector.extract_strided_slice %59 {offsets = [2, 0], sizes = [2, 32], strides = [1, 1]} : vector<16x32xf32> to vector<2x32xf32>
    %cst_43 = arith.constant dense<0.000000e+00> : vector<2x32xf32>
    %68 = tpu.matmul %65, %54, %cst_43 {dimension_numbers = #tpu.dot_dimension_numbers<[1], [0], [0], [1], [0, 0, 1, 1], [], []>} : vector<2x32xf32>, vector<32x32xf32>, vector<2x32xf32> -> vector<2x32xf32>
    %69 = arith.addf %67, %68 : vector<2x32xf32>
    %70 = math.tanh %69 : vector<2x32xf32>
    %71 = arith.addf %66, %70 : vector<2x32xf32>
    %72 = vector.extract_strided_slice %59 {offsets = [4, 0], sizes = [2, 32], strides = [1, 1]} : vector<16x32xf32> to vector<2x32xf32>
    %cst_44 = arith.constant dense<0.000000e+00> : vector<2x32xf32>
    %73 = tpu.matmul %70, %54, %cst_44 {dimension_numbers = #tpu.dot_dimension_numbers<[1], [0], [0], [1], [0, 0, 1, 1], [], []>} : vector<2x32xf32>, vector<32x32xf32>, vector<2x32xf32> -> vector<2x32xf32>
    %74 = arith.addf %72, %73 : vector<2x32xf32>
    %75 = math.tanh %74 : vector<2x32xf32>
    %76 = arith.addf %71, %75 : vector<2x32xf32>
    %77 = vector.extract_strided_slice %59 {offsets = [6, 0], sizes = [2, 32], strides = [1, 1]} : vector<16x32xf32> to vector<2x32xf32>
    %cst_45 = arith.constant dense<0.000000e+00> : vector<2x32xf32>
    %78 = tpu.matmul %75, %54, %cst_45 {dimension_numbers = #tpu.dot_dimension_numbers<[1], [0], [0], [1], [0, 0, 1, 1], [], []>} : vector<2x32xf32>, vector<32x32xf32>, vector<2x32xf32> -> vector<2x32xf32>
    %79 = arith.addf %77, %78 : vector<2x32xf32>
    %80 = math.tanh %79 : vector<2x32xf32>
    %81 = arith.addf %76, %80 : vector<2x32xf32>
    %82 = vector.extract_strided_slice %59 {offsets = [8, 0], sizes = [2, 32], strides = [1, 1]} : vector<16x32xf32> to vector<2x32xf32>
    %cst_46 = arith.constant dense<0.000000e+00> : vector<2x32xf32>
    %83 = tpu.matmul %80, %54, %cst_46 {dimension_numbers = #tpu.dot_dimension_numbers<[1], [0], [0], [1], [0, 0, 1, 1], [], []>} : vector<2x32xf32>, vector<32x32xf32>, vector<2x32xf32> -> vector<2x32xf32>
    %84 = arith.addf %82, %83 : vector<2x32xf32>
    %85 = math.tanh %84 : vector<2x32xf32>
    %86 = arith.addf %81, %85 : vector<2x32xf32>
    %87 = vector.extract_strided_slice %59 {offsets = [10, 0], sizes = [2, 32], strides = [1, 1]} : vector<16x32xf32> to vector<2x32xf32>
    %cst_47 = arith.constant dense<0.000000e+00> : vector<2x32xf32>
    %88 = tpu.matmul %85, %54, %cst_47 {dimension_numbers = #tpu.dot_dimension_numbers<[1], [0], [0], [1], [0, 0, 1, 1], [], []>} : vector<2x32xf32>, vector<32x32xf32>, vector<2x32xf32> -> vector<2x32xf32>
    %89 = arith.addf %87, %88 : vector<2x32xf32>
    %90 = math.tanh %89 : vector<2x32xf32>
    %91 = arith.addf %86, %90 : vector<2x32xf32>
    %92 = vector.extract_strided_slice %59 {offsets = [12, 0], sizes = [2, 32], strides = [1, 1]} : vector<16x32xf32> to vector<2x32xf32>
    %cst_48 = arith.constant dense<0.000000e+00> : vector<2x32xf32>
    %93 = tpu.matmul %90, %54, %cst_48 {dimension_numbers = #tpu.dot_dimension_numbers<[1], [0], [0], [1], [0, 0, 1, 1], [], []>} : vector<2x32xf32>, vector<32x32xf32>, vector<2x32xf32> -> vector<2x32xf32>
    %94 = arith.addf %92, %93 : vector<2x32xf32>
    %95 = math.tanh %94 : vector<2x32xf32>
    %96 = arith.addf %91, %95 : vector<2x32xf32>
    %97 = vector.extract_strided_slice %59 {offsets = [14, 0], sizes = [2, 32], strides = [1, 1]} : vector<16x32xf32> to vector<2x32xf32>
    %cst_49 = arith.constant dense<0.000000e+00> : vector<2x32xf32>
    %98 = tpu.matmul %95, %54, %cst_49 {dimension_numbers = #tpu.dot_dimension_numbers<[1], [0], [0], [1], [0, 0, 1, 1], [], []>} : vector<2x32xf32>, vector<32x32xf32>, vector<2x32xf32> -> vector<2x32xf32>
    %99 = arith.addf %97, %98 : vector<2x32xf32>
    %100 = math.tanh %99 : vector<2x32xf32>
    %101 = arith.addf %96, %100 : vector<2x32xf32>
    %c1_50 = arith.constant 1 : index
    %c0_51 = arith.constant 0 : index
    %c0_52 = arith.constant 0 : index
    %102 = vector.load %arg8[%c1_50, %c0_51, %c0_52] : memref<2x2x32xf32, #tpu.memory_space<vmem>>, vector<1x2x32xf32>
    %103 = vector.shape_cast %102 : vector<1x2x32xf32> to vector<2x32xf32>
    %104 = vector.shape_cast %100 : vector<2x32xf32> to vector<1x2x32xf32>
    tpu.vector_store %arg8[%c1_50, %c0_51, %c0_52], %104 {strides = array<i32>} : memref<2x2x32xf32, #tpu.memory_space<vmem>>, vector<1x2x32xf32>,
    %105 = vector.shape_cast %101 : vector<2x32xf32> to vector<1x2x32xf32>
    %cst_53 = arith.constant dense<0.000000e+00> : vector<1xf32>
    %106 = vector.multi_reduction <add>, %105, %cst_53 [1, 2] : vector<1x2x32xf32> to vector<1xf32>
    %107 = vector.shape_cast %106 : vector<1xf32> to vector<1x1x1xf32>
    %108 = vector.extract %107[0, 0, 0] : f32 from vector<1x1x1xf32>
    %cst_54 = arith.constant 5.120000e+02 : f32
    %109 = arith.divf %108, %cst_54 : f32
    %c0_55 = arith.constant 0 : index
    %c0_56 = arith.constant 0 : index
    %110 = memref.load %arg9[%c0_55, %c0_56] : memref<1x1xf32, #tpu.memory_space<smem>>
    memref.store %109, %arg9[%c0_55, %c0_56] : memref<1x1xf32, #tpu.memory_space<smem>>
    return
  }
}

</mosaic_0001>

<llo_original>
// kernel: test_rnn_forward.1
$region0: #{test_rnn_forward.1}
  #allocation0 [shape = 'u32[]', space=smem, size = 0x4, offset = 0x4, fixed_abs, tag = 'smem constant byte address 0x4 - core index']
  #allocation1 [shape = 'u32[144,128]{1,0:T(1,128)}', space=vmem, size = 0x12000, scoped, tag = 'internal scratch']
  #allocation2 [shape = 'f32[16,32]{1,0:T(8,128)}', space=vmem, size = 0x2000, scoped, tag = 'scratch operand']
  %s0 = inlined_call_operand.vmem [shape: f32[16,4], index: 0, kind: input, shape index: {}]
  %s1 = inlined_call_operand.vmem [shape: f32[2,2,32], index: 1, kind: input, shape index: {}]
  %s2 = inlined_call_operand.hbm [shape: f32[4,32], index: 2, kind: input, shape index: {}]
  %s3 = inlined_call_operand.vmem [shape: f32[32,32], index: 3, kind: input, shape index: {}]
  %s4 = inlined_call_operand.vmem [shape: f32[1,32], index: 4, kind: input, shape index: {}]
  %s5 = inlined_call_operand.hbm [shape: f32[32,32], index: 5, kind: input, shape index: {}]
  %s6 = inlined_call_operand.hbm [shape: f32[32,32], index: 6, kind: input, shape index: {}]
  %s7 = inlined_call_operand.vmem [shape: f32[1,32], index: 7, kind: input, shape index: {}]
  %s8 = inlined_call_operand.hbm [shape: f32[2,2,32], index: 8, kind: output, shape index: {0}]
  %s9 = inlined_call_operand.hbm [shape: f32[1,1], index: 9, kind: output, shape index: {1}]
  %10 = xla_tuple %s8, %s9
  %s11 = sld [smem:[#allocation0]]
  $region62: #{test_rnn_forward.1} parent=0
    _
  %s13 = ssub.s32 1, %s11
  %s14 = scalar_select 0, %s13, %s11
  $region1: #{test_rnn_forward.1} parent=0
    #allocation3 [shape = 'u8[2048]{0}', space=vmem, size = 0x800, scoped, tag = 'input window, operand 2, single buffered']
    #allocation4 [shape = 's32[1]{0}', space=sflag, size = 0x4, scoped, tag = 'scoped memory for test_rnn_forward.1']
    #allocation5 [shape = 's32[1]{0}', space=sflag, size = 0x4, scoped, tag = 'scoped memory for test_rnn_forward.1']
    #allocation6 [shape = 's32[1]{0}', space=sflag, size = 0x4, scoped, tag = 'scoped memory for test_rnn_forward.1']
    #allocation7 [shape = 'u8[16384]{0}', space=vmem, size = 0x4000, scoped, tag = 'input window, operand 5, single buffered']
    #allocation8 [shape = 's32[1]{0}', space=sflag, size = 0x4, scoped, tag = 'scoped memory for test_rnn_forward.1']
    #allocation9 [shape = 'u8[16384]{0}', space=vmem, size = 0x4000, scoped, tag = 'input window, operand 6, single buffered']
    #allocation10 [shape = 'u8[2048]{0}', space=vmem, size = 0x800, scoped, tag = 'output window, operand 0, single buffered']
    #allocation11 [shape = 'u8[512]{0}', space=smem, size = 0x200, scoped, tag = 'output window, operand 1, single buffered']
    %15 = vsyncpa [#allocation4], 0
    %16 = vsyncpa [#allocation8], 0
    %17 = vsyncpa [#allocation5], 0
    %18 = vsyncpa [#allocation6], 0
    // Predicated region
    $region2: #{test_rnn_forward.1} parent=1 // pred_check
      _
    $region3: #{test_rnn_forward.1} parent=1 // pred_check_branch
      %20 = sbr.rel (0) target = $region5
    $region4: #{test_rnn_forward.1} parent=1 // pred_region
      _
    $region5: #{test_rnn_forward.1} parent=1 // pred_fallthru
      _
    // Predicated region
    $region6: #{test_rnn_forward.1} parent=1 // pred_check
      _
    $region7: #{test_rnn_forward.1} parent=1 // pred_check_branch
      %22 = sbr.rel (0) target = $region9
    $region8: #{test_rnn_forward.1} parent=1 // pred_region
      _
    $region9: #{test_rnn_forward.1} parent=1 // pred_fallthru
      _
    // Predicated region
    $region10: #{test_rnn_forward.1} parent=1 // pred_check
      _
    $region11: #{test_rnn_forward.1} parent=1 // pred_check_branch
      %24 = sbr.rel (0) target = $region13
    $region12: #{test_rnn_forward.1} parent=1 // pred_region
      %s26 = ssub.s32 64, 64
      %27 = vsyncadd [#allocation4], %s26
      %s29 = sshll.u32 [#allocation3], 4
      %s30 = int_to_ptr.vmem [resolvable:$true] %s29
      %32 = dma.hbm_to_vmem [thread:$0]  %s2, 64, %s30, [#allocation4]
    $region13: #{test_rnn_forward.1} parent=1 // pred_fallthru
      _
    // Predicated region
    $region14: #{test_rnn_forward.1} parent=1 // pred_check
      _
    $region15: #{test_rnn_forward.1} parent=1 // pred_check_branch
      %34 = sbr.rel (0) target = $region17
    $region16: #{test_rnn_forward.1} parent=1 // pred_region
      _
    $region17: #{test_rnn_forward.1} parent=1 // pred_fallthru
      _
    // Predicated region
    $region18: #{test_rnn_forward.1} parent=1 // pred_check
      _
    $region19: #{test_rnn_forward.1} parent=1 // pred_check_branch
      %36 = sbr.rel (0) target = $region21
    $region20: #{test_rnn_forward.1} parent=1 // pred_region
      _
    $region21: #{test_rnn_forward.1} parent=1 // pred_fallthru
      _
    // Predicated region
    $region22: #{test_rnn_forward.1} parent=1 // pred_check
      _
    $region23: #{test_rnn_forward.1} parent=1 // pred_check_branch
      %38 = sbr.rel (0) target = $region25
    $region24: #{test_rnn_forward.1} parent=1 // pred_region
      %s40 = ssub.s32 512, 512
      %41 = vsyncadd [#allocation8], %s40
      %s42 = sshll.u32 [#allocation7], 4
      %s43 = int_to_ptr.vmem [resolvable:$true] %s42
      %48 = dma.hbm_to_vmem [thread:$0]  %s5, 512, %s43, [#allocation8], 128, 128, 8
    $region25: #{test_rnn_forward.1} parent=1 // pred_fallthru
      _
    // Predicated region
    $region26: #{test_rnn_forward.1} parent=1 // pred_check
      _
    $region27: #{test_rnn_forward.1} parent=1 // pred_check_branch
      %50 = sbr.rel (0) target = $region29
    $region28: #{test_rnn_forward.1} parent=1 // pred_region
      %s52 = ssub.s32 512, 512
      %53 = vsyncadd [#allocation8], %s52
      %s54 = sshll.u32 [#allocation9], 4
      %s55 = int_to_ptr.vmem [resolvable:$true] %s54
      %60 = dma.hbm_to_vmem [thread:$0]  %s6, 512, %s55, [#allocation8], 128, 128, 8
    $region29: #{test_rnn_forward.1} parent=1 // pred_fallthru
      _
    // Predicated region
    $region30: #{test_rnn_forward.1} parent=1 // pred_check
      _
    $region31: #{test_rnn_forward.1} parent=1 // pred_check_branch
      %62 = sbr.rel (0) target = $region33
    $region32: #{test_rnn_forward.1} parent=1 // pred_region
      _
    $region33: #{test_rnn_forward.1} parent=1 // pred_fallthru
      _
    // Predicated region
    $region34: #{test_rnn_forward.1} parent=1 // pred_check
      _
    $region35: #{test_rnn_forward.1} parent=1 // pred_check_branch
      %64 = sbr.rel (0) target = $region37
    $region36: #{test_rnn_forward.1} parent=1 // pred_region
      %65 = dma.done [#allocation4], 64
    $region37: #{test_rnn_forward.1} parent=1 // pred_fallthru
      _
    // Predicated region
    $region38: #{test_rnn_forward.1} parent=1 // pred_check
      _
    $region39: #{test_rnn_forward.1} parent=1 // pred_check_branch
      %67 = sbr.rel (0) target = $region41
    $region40: #{test_rnn_forward.1} parent=1 // pred_region
      %68 = dma.done [#allocation8], 512
    $region41: #{test_rnn_forward.1} parent=1 // pred_fallthru
      _
    // Predicated region
    $region42: #{test_rnn_forward.1} parent=1 // pred_check
      _
    $region43: #{test_rnn_forward.1} parent=1 // pred_check_branch
      %70 = sbr.rel (0) target = $region45
    $region44: #{test_rnn_forward.1} parent=1 // pred_region
      %71 = dma.done [#allocation8], 512
    $region45: #{test_rnn_forward.1} parent=1 // pred_fallthru
      _
    %v72 = vld [vmem:[#allocation3] sm:$0xf]
    %v73 = vld [vmem:[%s3] sm:$0xff]
    %v74 = vld [vmem:[%s3 + $0x8] sm:$0xff]
    %v75 = vld [vmem:[%s3 + $0x10] sm:$0xff]
    %v76 = vld [vmem:[%s3 + $0x18] sm:$0xff]
    %v77 = vld [vmem:[%s4] sm:$0x1]
    %v78 = vld [vmem:[%s0] sm:$0xff]
    %v79 = vld [vmem:[%s0 + $0x8] sm:$0xff]
    %v81 = vlaneseq
    %v82 = vshrl.u32 %v81, 7
    %v83 = vsub.s32 0, %v82
    %v84 = vrot.slane %v77, %v83
    %vm86 = vcmask 31744
    %v88 = vsel %vm86, %v78, 0
    %v91 = vsel %vm86, %v79, 0
    %vm93 = vcmask 1043456
    %v95 = vsel %vm93, %v72, 0
    %97 = vmatprep.subr.mxu0 0.0
    %98 = vmatpush1.msra.mxu0 %v95
    %99 = vmatprep.subr.mxu0 0.0
    %100 = vmatpush1.msra.mxu0 0.0
    %101 = vmatprep.subr.mxu0 0.0
    %102 = vmatpush1.msra.mxu0 0.0
    %103 = vmatprep.subr.mxu0 0.0
    %104 = vmatpush1.msra.mxu0 0.0
    %105 = vmatprep.subr.mxu0 0.0
    %106 = vmatpush1.msra.mxu0 0.0
    %107 = vmatprep.subr.mxu0 0.0
    %108 = vmatpush1.msra.mxu0 0.0
    %109 = vmatprep.subr.mxu0 0.0
    %110 = vmatpush1.msra.mxu0 0.0
    %111 = vmatprep.subr.mxu0 0.0
    %112 = vmatpush1.msra.mxu0 0.0
    %113 = vmatprep.subr.mxu0 0.0
    %114 = vmatpush1.msra.mxu0 0.0
    %115 = vmatprep.subr.mxu0 0.0
    %116 = vmatpush1.msra.mxu0 0.0
    %117 = vmatprep.subr.mxu0 0.0
    %118 = vmatpush1.msra.mxu0 0.0
    %119 = vmatprep.subr.mxu0 0.0
    %120 = vmatpush1.msra.mxu0 0.0
    %121 = vmatprep.subr.mxu0 0.0
    %122 = vmatpush1.msra.mxu0 0.0
    %123 = vmatprep.subr.mxu0 0.0
    %124 = vmatpush1.msra.mxu0 0.0
    %125 = vmatprep.subr.mxu0 0.0
    %126 = vmatpush1.msra.mxu0 0.0
    %127 = vmatprep.subr.mxu0 0.0
    %128 = vmatpush1.msra.mxu0 0.0
    %129 = vmatprep.subr.mxu0 0.0
    %130 = vmatpush1.msra.mxu0 0.0
    %131 = vmatprep.subr.mxu0 0.0
    %132 = vmatpush1.msra.mxu0 0.0
    %133 = vmatprep.subr.mxu0 0.0
    %134 = vmatpush1.msra.mxu0 0.0
    %135 = vmatprep.subr.mxu0 0.0
    %136 = vmatpush1.msra.mxu0 0.0
    %137 = vmatprep.subr.mxu0 0.0
    %138 = vmatpush1.msra.mxu0 0.0
    %139 = vmatprep.subr.mxu0 0.0
    %140 = vmatpush1.msra.mxu0 0.0
    %141 = vmatprep.subr.mxu0 0.0
    %142 = vmatpush1.msra.mxu0 0.0
    %143 = vmatprep.subr.mxu0 0.0
    %144 = vmatpush1.msra.mxu0 0.0
    %145 = vmatprep.subr.mxu0 0.0
    %146 = vmatpush1.msra.mxu0 0.0
    %147 = vmatprep.subr.mxu0 0.0
    %148 = vmatpush1.msra.mxu0 0.0
    %149 = vmatprep.subr.mxu0 0.0
    %150 = vmatpush1.msra.mxu0 0.0
    %151 = vmatprep.subr.mxu0 0.0
    %152 = vmatpush1.msra.mxu0 0.0
    %153 = vmatprep.subr.mxu0 0.0
    %154 = vmatpush1.msra.mxu0 0.0
    %155 = vmatprep.subr.mxu0 0.0
    %156 = vmatpush1.msra.mxu0 0.0
    %157 = vmatprep.subr.mxu0 0.0
    %158 = vmatpush1.msra.mxu0 0.0
    %159 = vmatprep.subr.mxu0 0.0
    %160 = vmatpush1.msra.mxu0 0.0
    %161 = vmatprep.mubr.f32.mxu0 0.0
    %162 = vmatmul.mubr.f32.gmra.mrb[0].mxu0 %v88
    %v163 = vpop.f32.mrb[0].mxu0
    %v164 = vadd.f32 %v84, %v163
    %v165 = vpop.f32.mrb[0].mxu0
    %166 = vmatprep.mubr.f32.mxu0 0.0
    %167 = vmatmul.mubr.f32.gmra.mrb[0].mxu0 %v91
    %v168 = vpop.f32.mrb[0].mxu0
    %v169 = vadd.f32 %v84, %v168
    %v170 = vpop.f32.mrb[0].mxu0
    %171 = vdwg.mxu0
    %v172 = vld [vmem:[%s1] sm:$0x3]
    %vm173 = vcmask 261120
    %v175 = vsel %vm173, %v172, 0
    %177 = vmatprep.subr.mxu0 0.0
    %178 = vmatpush1.msra.mxu0 %v73
    %179 = vmatprep.subr.mxu0 0.0
    %180 = vmatpush1.msra.mxu0 %v74
    %181 = vmatprep.subr.mxu0 0.0
    %182 = vmatpush1.msra.mxu0 %v75
    %183 = vmatprep.subr.mxu0 0.0
    %184 = vmatpush1.msra.mxu0 %v76
    %185 = vmatprep.subr.mxu0 0.0
    %186 = vmatpush1.msra.mxu0 0.0
    %187 = vmatprep.subr.mxu0 0.0
    %188 = vmatpush1.msra.mxu0 0.0
    %189 = vmatprep.subr.mxu0 0.0
    %190 = vmatpush1.msra.mxu0 0.0
    %191 = vmatprep.subr.mxu0 0.0
    %192 = vmatpush1.msra.mxu0 0.0
    %193 = vmatprep.subr.mxu0 0.0
    %194 = vmatpush1.msra.mxu0 0.0
    %195 = vmatprep.subr.mxu0 0.0
    %196 = vmatpush1.msra.mxu0 0.0
    %197 = vmatprep.subr.mxu0 0.0
    %198 = vmatpush1.msra.mxu0 0.0
    %199 = vmatprep.subr.mxu0 0.0
    %200 = vmatpush1.msra.mxu0 0.0
    %201 = vmatprep.subr.mxu0 0.0
    %202 = vmatpush1.msra.mxu0 0.0
    %203 = vmatprep.subr.mxu0 0.0
    %204 = vmatpush1.msra.mxu0 0.0
    %205 = vmatprep.subr.mxu0 0.0
    %206 = vmatpush1.msra.mxu0 0.0
    %207 = vmatprep.subr.mxu0 0.0
    %208 = vmatpush1.msra.mxu0 0.0
    %209 = vmatprep.subr.mxu0 0.0
    %210 = vmatpush1.msra.mxu0 0.0
    %211 = vmatprep.subr.mxu0 0.0
    %212 = vmatpush1.msra.mxu0 0.0
    %213 = vmatprep.subr.mxu0 0.0
    %214 = vmatpush1.msra.mxu0 0.0
    %215 = vmatprep.subr.mxu0 0.0
    %216 = vmatpush1.msra.mxu0 0.0
    %217 = vmatprep.subr.mxu0 0.0
    %218 = vmatpush1.msra.mxu0 0.0
    %219 = vmatprep.subr.mxu0 0.0
    %220 = vmatpush1.msra.mxu0 0.0
    %221 = vmatprep.subr.mxu0 0.0
    %222 = vmatpush1.msra.mxu0 0.0
    %223 = vmatprep.subr.mxu0 0.0
    %224 = vmatpush1.msra.mxu0 0.0
    %225 = vmatprep.subr.mxu0 0.0
    %226 = vmatpush1.msra.mxu0 0.0
    %227 = vmatprep.subr.mxu0 0.0
    %228 = vmatpush1.msra.mxu0 0.0
    %229 = vmatprep.subr.mxu0 0.0
    %230 = vmatpush1.msra.mxu0 0.0
    %231 = vmatprep.subr.mxu0 0.0
    %232 = vmatpush1.msra.mxu0 0.0
    %233 = vmatprep.subr.mxu0 0.0
    %234 = vmatpush1.msra.mxu0 0.0
    %235 = vmatprep.subr.mxu0 0.0
    %236 = vmatpush1.msra.mxu0 0.0
    %237 = vmatprep.subr.mxu0 0.0
    %238 = vmatpush1.msra.mxu0 0.0
    %239 = vmatprep.subr.mxu0 0.0
    %240 = vmatpush1.msra.mxu0 0.0
    %241 = vmatprep.mubr.f32.mxu0 0.0
    %242 = vmatmul.mubr.f32.gmra.mrb[0].mxu0 %v175
    %v243 = vpop.f32.mrb[0].mxu0
    %v244 = vadd.f32 0.0, %v243
    %v245 = vpop.f32.mrb[0].mxu0
    %246 = vdwg.mxu0
    %v247 = vadd.f32 %v164, %v244
    %v248 = vtanh.pop %v247
    %vm249 = vcmask 254976
    %250 = vst.msk [vmem:[#allocation2] sm:$0x3] %vm249, %v248
    %v252 = vsel %vm173, %v248, 0
    %254 = vmatprep.subr.mxu0 0.0
    %255 = vmatpush1.msra.mxu0 %v73
    %256 = vmatprep.subr.mxu0 0.0
    %257 = vmatpush1.msra.mxu0 %v74
    %258 = vmatprep.subr.mxu0 0.0
    %259 = vmatpush1.msra.mxu0 %v75
    %260 = vmatprep.subr.mxu0 0.0
    %261 = vmatpush1.msra.mxu0 %v76
    %262 = vmatprep.subr.mxu0 0.0
    %263 = vmatpush1.msra.mxu0 0.0
    %264 = vmatprep.subr.mxu0 0.0
    %265 = vmatpush1.msra.mxu0 0.0
    %266 = vmatprep.subr.mxu0 0.0
    %267 = vmatpush1.msra.mxu0 0.0
    %268 = vmatprep.subr.mxu0 0.0
    %269 = vmatpush1.msra.mxu0 0.0
    %270 = vmatprep.subr.mxu0 0.0
    %271 = vmatpush1.msra.mxu0 0.0
    %272 = vmatprep.subr.mxu0 0.0
    %273 = vmatpush1.msra.mxu0 0.0
    %274 = vmatprep.subr.mxu0 0.0
    %275 = vmatpush1.msra.mxu0 0.0
    %276 = vmatprep.subr.mxu0 0.0
    %277 = vmatpush1.msra.mxu0 0.0
    %278 = vmatprep.subr.mxu0 0.0
    %279 = vmatpush1.msra.mxu0 0.0
    %280 = vmatprep.subr.mxu0 0.0
    %281 = vmatpush1.msra.mxu0 0.0
    %282 = vmatprep.subr.mxu0 0.0
    %283 = vmatpush1.msra.mxu0 0.0
    %284 = vmatprep.subr.mxu0 0.0
    %285 = vmatpush1.msra.mxu0 0.0
    %286 = vmatprep.subr.mxu0 0.0
    %287 = vmatpush1.msra.mxu0 0.0
    %288 = vmatprep.subr.mxu0 0.0
    %289 = vmatpush1.msra.mxu0 0.0
    %290 = vmatprep.subr.mxu0 0.0
    %291 = vmatpush1.msra.mxu0 0.0
    %292 = vmatprep.subr.mxu0 0.0
    %293 = vmatpush1.msra.mxu0 0.0
    %294 = vmatprep.subr.mxu0 0.0
    %295 = vmatpush1.msra.mxu0 0.0
    %296 = vmatprep.subr.mxu0 0.0
    %297 = vmatpush1.msra.mxu0 0.0
    %298 = vmatprep.subr.mxu0 0.0
    %299 = vmatpush1.msra.mxu0 0.0
    %300 = vmatprep.subr.mxu0 0.0
    %301 = vmatpush1.msra.mxu0 0.0
    %302 = vmatprep.subr.mxu0 0.0
    %303 = vmatpush1.msra.mxu0 0.0
    %304 = vmatprep.subr.mxu0 0.0
    %305 = vmatpush1.msra.mxu0 0.0
    %306 = vmatprep.subr.mxu0 0.0
    %307 = vmatpush1.msra.mxu0 0.0
    %308 = vmatprep.subr.mxu0 0.0
    %309 = vmatpush1.msra.mxu0 0.0
    %310 = vmatprep.subr.mxu0 0.0
    %311 = vmatpush1.msra.mxu0 0.0
    %312 = vmatprep.subr.mxu0 0.0
    %313 = vmatpush1.msra.mxu0 0.0
    %314 = vmatprep.subr.mxu0 0.0
    %315 = vmatpush1.msra.mxu0 0.0
    %316 = vmatprep.subr.mxu0 0.0
    %317 = vmatpush1.msra.mxu0 0.0
    %318 = vmatprep.mubr.f32.mxu0 0.0
    %319 = vmatmul.mubr.f32.gmra.mrb[0].mxu0 %v252
    %v320 = vpop.f32.mrb[0].mxu0
    %v321 = vadd.f32 0.0, %v320
    %v322 = vpop.f32.mrb[0].mxu0
    %323 = vdwg.mxu0
    %v325 = vrot.slane %v321, 6
    %v327 = vadd.f32 %v164, %v325
    %v328 = vtanh.pop %v327
    %vm329 = vcmask 257026
    %330 = vst.msk [vmem:[#allocation2] sm:$0xc] %vm329, %v328
    %v332 = vrot.slane %v328, 2
    %v333 = vsel %vm173, %v332, 0
    %335 = vmatprep.subr.mxu0 0.0
    %336 = vmatpush1.msra.mxu0 %v73
    %337 = vmatprep.subr.mxu0 0.0
    %338 = vmatpush1.msra.mxu0 %v74
    %339 = vmatprep.subr.mxu0 0.0
    %340 = vmatpush1.msra.mxu0 %v75
    %341 = vmatprep.subr.mxu0 0.0
    %342 = vmatpush1.msra.mxu0 %v76
    %343 = vmatprep.subr.mxu0 0.0
    %344 = vmatpush1.msra.mxu0 0.0
    %345 = vmatprep.subr.mxu0 0.0
    %346 = vmatpush1.msra.mxu0 0.0
    %347 = vmatprep.subr.mxu0 0.0
    %348 = vmatpush1.msra.mxu0 0.0
    %349 = vmatprep.subr.mxu0 0.0
    %350 = vmatpush1.msra.mxu0 0.0
    %351 = vmatprep.subr.mxu0 0.0
    %352 = vmatpush1.msra.mxu0 0.0
    %353 = vmatprep.subr.mxu0 0.0
    %354 = vmatpush1.msra.mxu0 0.0
    %355 = vmatprep.subr.mxu0 0.0
    %356 = vmatpush1.msra.mxu0 0.0
    %357 = vmatprep.subr.mxu0 0.0
    %358 = vmatpush1.msra.mxu0 0.0
    %359 = vmatprep.subr.mxu0 0.0
    %360 = vmatpush1.msra.mxu0 0.0
    %361 = vmatprep.subr.mxu0 0.0
    %362 = vmatpush1.msra.mxu0 0.0
    %363 = vmatprep.subr.mxu0 0.0
    %364 = vmatpush1.msra.mxu0 0.0
    %365 = vmatprep.subr.mxu0 0.0
    %366 = vmatpush1.msra.mxu0 0.0
    %367 = vmatprep.subr.mxu0 0.0
    %368 = vmatpush1.msra.mxu0 0.0
    %369 = vmatprep.subr.mxu0 0.0
    %370 = vmatpush1.msra.mxu0 0.0
    %371 = vmatprep.subr.mxu0 0.0
    %372 = vmatpush1.msra.mxu0 0.0
    %373 = vmatprep.subr.mxu0 0.0
    %374 = vmatpush1.msra.mxu0 0.0
    %375 = vmatprep.subr.mxu0 0.0
    %376 = vmatpush1.msra.mxu0 0.0
    %377 = vmatprep.subr.mxu0 0.0
    %378 = vmatpush1.msra.mxu0 0.0
    %379 = vmatprep.subr.mxu0 0.0
    %380 = vmatpush1.msra.mxu0 0.0
    %381 = vmatprep.subr.mxu0 0.0
    %382 = vmatpush1.msra.mxu0 0.0
    %383 = vmatprep.subr.mxu0 0.0
    %384 = vmatpush1.msra.mxu0 0.0
    %385 = vmatprep.subr.mxu0 0.0
    %386 = vmatpush1.msra.mxu0 0.0
    %387 = vmatprep.subr.mxu0 0.0
    %388 = vmatpush1.msra.mxu0 0.0
    %389 = vmatprep.subr.mxu0 0.0
    %390 = vmatpush1.msra.mxu0 0.0
    %391 = vmatprep.subr.mxu0 0.0
    %392 = vmatpush1.msra.mxu0 0.0
    %393 = vmatprep.subr.mxu0 0.0
    %394 = vmatpush1.msra.mxu0 0.0
    %395 = vmatprep.subr.mxu0 0.0
    %396 = vmatpush1.msra.mxu0 0.0
    %397 = vmatprep.subr.mxu0 0.0
    %398 = vmatpush1.msra.mxu0 0.0
    %399 = vmatprep.mubr.f32.mxu0 0.0
    %400 = vmatmul.mubr.f32.gmra.mrb[0].mxu0 %v333
    %v401 = vpop.f32.mrb[0].mxu0
    %v402 = vadd.f32 0.0, %v401
    %v403 = vpop.f32.mrb[0].mxu0
    %404 = vdwg.mxu0
    %v406 = vrot.slane %v402, 4
    %v408 = vadd.f32 %v164, %v406
    %v409 = vtanh.pop %v408
    %vm410 = vcmask 259076
    %411 = vst.msk [vmem:[#allocation2] sm:$0x30] %vm410, %v409
    %v413 = vrot.slane %v409, 4
    %v414 = vsel %vm173, %v413, 0
    %416 = vmatprep.subr.mxu0 0.0
    %417 = vmatpush1.msra.mxu0 %v73
    %418 = vmatprep.subr.mxu0 0.0
    %419 = vmatpush1.msra.mxu0 %v74
    %420 = vmatprep.subr.mxu0 0.0
    %421 = vmatpush1.msra.mxu0 %v75
    %422 = vmatprep.subr.mxu0 0.0
    %423 = vmatpush1.msra.mxu0 %v76
    %424 = vmatprep.subr.mxu0 0.0
    %425 = vmatpush1.msra.mxu0 0.0
    %426 = vmatprep.subr.mxu0 0.0
    %427 = vmatpush1.msra.mxu0 0.0
    %428 = vmatprep.subr.mxu0 0.0
    %429 = vmatpush1.msra.mxu0 0.0
    %430 = vmatprep.subr.mxu0 0.0
    %431 = vmatpush1.msra.mxu0 0.0
    %432 = vmatprep.subr.mxu0 0.0
    %433 = vmatpush1.msra.mxu0 0.0
    %434 = vmatprep.subr.mxu0 0.0
    %435 = vmatpush1.msra.mxu0 0.0
    %436 = vmatprep.subr.mxu0 0.0
    %437 = vmatpush1.msra.mxu0 0.0
    %438 = vmatprep.subr.mxu0 0.0
    %439 = vmatpush1.msra.mxu0 0.0
    %440 = vmatprep.subr.mxu0 0.0
    %441 = vmatpush1.msra.mxu0 0.0
    %442 = vmatprep.subr.mxu0 0.0
    %443 = vmatpush1.msra.mxu0 0.0
    %444 = vmatprep.subr.mxu0 0.0
    %445 = vmatpush1.msra.mxu0 0.0
    %446 = vmatprep.subr.mxu0 0.0
    %447 = vmatpush1.msra.mxu0 0.0
    %448 = vmatprep.subr.mxu0 0.0
    %449 = vmatpush1.msra.mxu0 0.0
    %450 = vmatprep.subr.mxu0 0.0
    %451 = vmatpush1.msra.mxu0 0.0
    %452 = vmatprep.subr.mxu0 0.0
    %453 = vmatpush1.msra.mxu0 0.0
    %454 = vmatprep.subr.mxu0 0.0
    %455 = vmatpush1.msra.mxu0 0.0
    %456 = vmatprep.subr.mxu0 0.0
    %457 = vmatpush1.msra.mxu0 0.0
    %458 = vmatprep.subr.mxu0 0.0
    %459 = vmatpush1.msra.mxu0 0.0
    %460 = vmatprep.subr.mxu0 0.0
    %461 = vmatpush1.msra.mxu0 0.0
    %462 = vmatprep.subr.mxu0 0.0
    %463 = vmatpush1.msra.mxu0 0.0
    %464 = vmatprep.subr.mxu0 0.0
    %465 = vmatpush1.msra.mxu0 0.0
    %466 = vmatprep.subr.mxu0 0.0
    %467 = vmatpush1.msra.mxu0 0.0
    %468 = vmatprep.subr.mxu0 0.0
    %469 = vmatpush1.msra.mxu0 0.0
    %470 = vmatprep.subr.mxu0 0.0
    %471 = vmatpush1.msra.mxu0 0.0
    %472 = vmatprep.subr.mxu0 0.0
    %473 = vmatpush1.msra.mxu0 0.0
    %474 = vmatprep.subr.mxu0 0.0
    %475 = vmatpush1.msra.mxu0 0.0
    %476 = vmatprep.subr.mxu0 0.0
    %477 = vmatpush1.msra.mxu0 0.0
    %478 = vmatprep.subr.mxu0 0.0
    %479 = vmatpush1.msra.mxu0 0.0
    %480 = vmatprep.mubr.f32.mxu0 0.0
    %481 = vmatmul.mubr.f32.gmra.mrb[0].mxu0 %v414
    %v482 = vpop.f32.mrb[0].mxu0
    %v483 = vadd.f32 0.0, %v482
    %v484 = vpop.f32.mrb[0].mxu0
    %485 = vdwg.mxu0
    %v487 = vrot.slane %v483, 2
    %v489 = vadd.f32 %v164, %v487
    %v490 = vtanh.pop %v489
    %vm491 = vcmask 261126
    %492 = vst.msk [vmem:[#allocation2] sm:$0xc0] %vm491, %v490
    %v494 = vrot.slane %v490, 6
    %v495 = vsel %vm173, %v494, 0
    %497 = vmatprep.subr.mxu0 0.0
    %498 = vmatpush1.msra.mxu0 %v73
    %499 = vmatprep.subr.mxu0 0.0
    %500 = vmatpush1.msra.mxu0 %v74
    %501 = vmatprep.subr.mxu0 0.0
    %502 = vmatpush1.msra.mxu0 %v75
    %503 = vmatprep.subr.mxu0 0.0
    %504 = vmatpush1.msra.mxu0 %v76
    %505 = vmatprep.subr.mxu0 0.0
    %506 = vmatpush1.msra.mxu0 0.0
    %507 = vmatprep.subr.mxu0 0.0
    %508 = vmatpush1.msra.mxu0 0.0
    %509 = vmatprep.subr.mxu0 0.0
    %510 = vmatpush1.msra.mxu0 0.0
    %511 = vmatprep.subr.mxu0 0.0
    %512 = vmatpush1.msra.mxu0 0.0
    %513 = vmatprep.subr.mxu0 0.0
    %514 = vmatpush1.msra.mxu0 0.0
    %515 = vmatprep.subr.mxu0 0.0
    %516 = vmatpush1.msra.mxu0 0.0
    %517 = vmatprep.subr.mxu0 0.0
    %518 = vmatpush1.msra.mxu0 0.0
    %519 = vmatprep.subr.mxu0 0.0
    %520 = vmatpush1.msra.mxu0 0.0
    %521 = vmatprep.subr.mxu0 0.0
    %522 = vmatpush1.msra.mxu0 0.0
    %523 = vmatprep.subr.mxu0 0.0
    %524 = vmatpush1.msra.mxu0 0.0
    %525 = vmatprep.subr.mxu0 0.0
    %526 = vmatpush1.msra.mxu0 0.0
    %527 = vmatprep.subr.mxu0 0.0
    %528 = vmatpush1.msra.mxu0 0.0
    %529 = vmatprep.subr.mxu0 0.0
    %530 = vmatpush1.msra.mxu0 0.0
    %531 = vmatprep.subr.mxu0 0.0
    %532 = vmatpush1.msra.mxu0 0.0
    %533 = vmatprep.subr.mxu0 0.0
    %534 = vmatpush1.msra.mxu0 0.0
    %535 = vmatprep.subr.mxu0 0.0
    %536 = vmatpush1.msra.mxu0 0.0
    %537 = vmatprep.subr.mxu0 0.0
    %538 = vmatpush1.msra.mxu0 0.0
    %539 = vmatprep.subr.mxu0 0.0
    %540 = vmatpush1.msra.mxu0 0.0
    %541 = vmatprep.subr.mxu0 0.0
    %542 = vmatpush1.msra.mxu0 0.0
    %543 = vmatprep.subr.mxu0 0.0
    %544 = vmatpush1.msra.mxu0 0.0
    %545 = vmatprep.subr.mxu0 0.0
    %546 = vmatpush1.msra.mxu0 0.0
    %547 = vmatprep.subr.mxu0 0.0
    %548 = vmatpush1.msra.mxu0 0.0
    %549 = vmatprep.subr.mxu0 0.0
    %550 = vmatpush1.msra.mxu0 0.0
    %551 = vmatprep.subr.mxu0 0.0
    %552 = vmatpush1.msra.mxu0 0.0
    %553 = vmatprep.subr.mxu0 0.0
    %554 = vmatpush1.msra.mxu0 0.0
    %555 = vmatprep.subr.mxu0 0.0
    %556 = vmatpush1.msra.mxu0 0.0
    %557 = vmatprep.subr.mxu0 0.0
    %558 = vmatpush1.msra.mxu0 0.0
    %559 = vmatprep.subr.mxu0 0.0
    %560 = vmatpush1.msra.mxu0 0.0
    %561 = vmatprep.mubr.f32.mxu0 0.0
    %562 = vmatmul.mubr.f32.gmra.mrb[0].mxu0 %v495
    %v563 = vpop.f32.mrb[0].mxu0
    %v564 = vadd.f32 0.0, %v563
    %v565 = vpop.f32.mrb[0].mxu0
    %566 = vdwg.mxu0
    %v567 = vadd.f32 %v169, %v564
    %v568 = vtanh.pop %v567
    %569 = vst.msk [vmem:[#allocation2 + $0x8] sm:$0x3] %vm249, %v568
    %v571 = vsel %vm173, %v568, 0
    %573 = vmatprep.subr.mxu0 0.0
    %574 = vmatpush1.msra.mxu0 %v73
    %575 = vmatprep.subr.mxu0 0.0
    %576 = vmatpush1.msra.mxu0 %v74
    %577 = vmatprep.subr.mxu0 0.0
    %578 = vmatpush1.msra.mxu0 %v75
    %579 = vmatprep.subr.mxu0 0.0
    %580 = vmatpush1.msra.mxu0 %v76
    %581 = vmatprep.subr.mxu0 0.0
    %582 = vmatpush1.msra.mxu0 0.0
    %583 = vmatprep.subr.mxu0 0.0
    %584 = vmatpush1.msra.mxu0 0.0
    %585 = vmatprep.subr.mxu0 0.0
    %586 = vmatpush1.msra.mxu0 0.0
    %587 = vmatprep.subr.mxu0 0.0
    %588 = vmatpush1.msra.mxu0 0.0
    %589 = vmatprep.subr.mxu0 0.0
    %590 = vmatpush1.msra.mxu0 0.0
    %591 = vmatprep.subr.mxu0 0.0
    %592 = vmatpush1.msra.mxu0 0.0
    %593 = vmatprep.subr.mxu0 0.0
    %594 = vmatpush1.msra.mxu0 0.0
    %595 = vmatprep.subr.mxu0 0.0
    %596 = vmatpush1.msra.mxu0 0.0
    %597 = vmatprep.subr.mxu0 0.0
    %598 = vmatpush1.msra.mxu0 0.0
    %599 = vmatprep.subr.mxu0 0.0
    %600 = vmatpush1.msra.mxu0 0.0
    %601 = vmatprep.subr.mxu0 0.0
    %602 = vmatpush1.msra.mxu0 0.0
    %603 = vmatprep.subr.mxu0 0.0
    %604 = vmatpush1.msra.mxu0 0.0
    %605 = vmatprep.subr.mxu0 0.0
    %606 = vmatpush1.msra.mxu0 0.0
    %607 = vmatprep.subr.mxu0 0.0
    %608 = vmatpush1.msra.mxu0 0.0
    %609 = vmatprep.subr.mxu0 0.0
    %610 = vmatpush1.msra.mxu0 0.0
    %611 = vmatprep.subr.mxu0 0.0
    %612 = vmatpush1.msra.mxu0 0.0
    %613 = vmatprep.subr.mxu0 0.0
    %614 = vmatpush1.msra.mxu0 0.0
    %615 = vmatprep.subr.mxu0 0.0
    %616 = vmatpush1.msra.mxu0 0.0
    %617 = vmatprep.subr.mxu0 0.0
    %618 = vmatpush1.msra.mxu0 0.0
    %619 = vmatprep.subr.mxu0 0.0
    %620 = vmatpush1.msra.mxu0 0.0
    %621 = vmatprep.subr.mxu0 0.0
    %622 = vmatpush1.msra.mxu0 0.0
    %623 = vmatprep.subr.mxu0 0.0
    %624 = vmatpush1.msra.mxu0 0.0
    %625 = vmatprep.subr.mxu0 0.0
    %626 = vmatpush1.msra.mxu0 0.0
    %627 = vmatprep.subr.mxu0 0.0
    %628 = vmatpush1.msra.mxu0 0.0
    %629 = vmatprep.subr.mxu0 0.0
    %630 = vmatpush1.msra.mxu0 0.0
    %631 = vmatprep.subr.mxu0 0.0
    %632 = vmatpush1.msra.mxu0 0.0
    %633 = vmatprep.subr.mxu0 0.0
    %634 = vmatpush1.msra.mxu0 0.0
    %635 = vmatprep.subr.mxu0 0.0
    %636 = vmatpush1.msra.mxu0 0.0
    %637 = vmatprep.mubr.f32.mxu0 0.0
    %638 = vmatmul.mubr.f32.gmra.mrb[0].mxu0 %v571
    %v639 = vpop.f32.mrb[0].mxu0
    %v640 = vadd.f32 0.0, %v639
    %v641 = vpop.f32.mrb[0].mxu0
    %642 = vdwg.mxu0
    %v644 = vrot.slane %v640, 6
    %v646 = vadd.f32 %v169, %v644
    %v647 = vtanh.pop %v646
    %648 = vst.msk [vmem:[#allocation2 + $0x8] sm:$0xc] %vm329, %v647
    %v650 = vrot.slane %v647, 2
    %v651 = vsel %vm173, %v650, 0
    %653 = vmatprep.subr.mxu0 0.0
    %654 = vmatpush1.msra.mxu0 %v73
    %655 = vmatprep.subr.mxu0 0.0
    %656 = vmatpush1.msra.mxu0 %v74
    %657 = vmatprep.subr.mxu0 0.0
    %658 = vmatpush1.msra.mxu0 %v75
    %659 = vmatprep.subr.mxu0 0.0
    %660 = vmatpush1.msra.mxu0 %v76
    %661 = vmatprep.subr.mxu0 0.0
    %662 = vmatpush1.msra.mxu0 0.0
    %663 = vmatprep.subr.mxu0 0.0
    %664 = vmatpush1.msra.mxu0 0.0
    %665 = vmatprep.subr.mxu0 0.0
    %666 = vmatpush1.msra.mxu0 0.0
    %667 = vmatprep.subr.mxu0 0.0
    %668 = vmatpush1.msra.mxu0 0.0
    %669 = vmatprep.subr.mxu0 0.0
    %670 = vmatpush1.msra.mxu0 0.0
    %671 = vmatprep.subr.mxu0 0.0
    %672 = vmatpush1.msra.mxu0 0.0
    %673 = vmatprep.subr.mxu0 0.0
    %674 = vmatpush1.msra.mxu0 0.0
    %675 = vmatprep.subr.mxu0 0.0
    %676 = vmatpush1.msra.mxu0 0.0
    %677 = vmatprep.subr.mxu0 0.0
    %678 = vmatpush1.msra.mxu0 0.0
    %679 = vmatprep.subr.mxu0 0.0
    %680 = vmatpush1.msra.mxu0 0.0
    %681 = vmatprep.subr.mxu0 0.0
    %682 = vmatpush1.msra.mxu0 0.0
    %683 = vmatprep.subr.mxu0 0.0
    %684 = vmatpush1.msra.mxu0 0.0
    %685 = vmatprep.subr.mxu0 0.0
    %686 = vmatpush1.msra.mxu0 0.0
    %687 = vmatprep.subr.mxu0 0.0
    %688 = vmatpush1.msra.mxu0 0.0
    %689 = vmatprep.subr.mxu0 0.0
    %690 = vmatpush1.msra.mxu0 0.0
    %691 = vmatprep.subr.mxu0 0.0
    %692 = vmatpush1.msra.mxu0 0.0
    %693 = vmatprep.subr.mxu0 0.0
    %694 = vmatpush1.msra.mxu0 0.0
    %695 = vmatprep.subr.mxu0 0.0
    %696 = vmatpush1.msra.mxu0 0.0
    %697 = vmatprep.subr.mxu0 0.0
    %698 = vmatpush1.msra.mxu0 0.0
    %699 = vmatprep.subr.mxu0 0.0
    %700 = vmatpush1.msra.mxu0 0.0
    %701 = vmatprep.subr.mxu0 0.0
    %702 = vmatpush1.msra.mxu0 0.0
    %703 = vmatprep.subr.mxu0 0.0
    %704 = vmatpush1.msra.mxu0 0.0
    %705 = vmatprep.subr.mxu0 0.0
    %706 = vmatpush1.msra.mxu0 0.0
    %707 = vmatprep.subr.mxu0 0.0
    %708 = vmatpush1.msra.mxu0 0.0
    %709 = vmatprep.subr.mxu0 0.0
    %710 = vmatpush1.msra.mxu0 0.0
    %711 = vmatprep.subr.mxu0 0.0
    %712 = vmatpush1.msra.mxu0 0.0
    %713 = vmatprep.subr.mxu0 0.0
    %714 = vmatpush1.msra.mxu0 0.0
    %715 = vmatprep.subr.mxu0 0.0
    %716 = vmatpush1.msra.mxu0 0.0
    %717 = vmatprep.mubr.f32.mxu0 0.0
    %718 = vmatmul.mubr.f32.gmra.mrb[0].mxu0 %v651
    %v719 = vpop.f32.mrb[0].mxu0
    %v720 = vadd.f32 0.0, %v719
    %v721 = vpop.f32.mrb[0].mxu0
    %722 = vdwg.mxu0
    %v724 = vrot.slane %v720, 4
    %v726 = vadd.f32 %v169, %v724
    %v727 = vtanh.pop %v726
    %728 = vst.msk [vmem:[#allocation2 + $0x8] sm:$0x30] %vm410, %v727
    %v730 = vrot.slane %v727, 4
    %v731 = vsel %vm173, %v730, 0
    %733 = vmatprep.subr.mxu0 0.0
    %734 = vmatpush1.msra.mxu0 %v73
    %735 = vmatprep.subr.mxu0 0.0
    %736 = vmatpush1.msra.mxu0 %v74
    %737 = vmatprep.subr.mxu0 0.0
    %738 = vmatpush1.msra.mxu0 %v75
    %739 = vmatprep.subr.mxu0 0.0
    %740 = vmatpush1.msra.mxu0 %v76
    %741 = vmatprep.subr.mxu0 0.0
    %742 = vmatpush1.msra.mxu0 0.0
    %743 = vmatprep.subr.mxu0 0.0
    %744 = vmatpush1.msra.mxu0 0.0
    %745 = vmatprep.subr.mxu0 0.0
    %746 = vmatpush1.msra.mxu0 0.0
    %747 = vmatprep.subr.mxu0 0.0
    %748 = vmatpush1.msra.mxu0 0.0
    %749 = vmatprep.subr.mxu0 0.0
    %750 = vmatpush1.msra.mxu0 0.0
    %751 = vmatprep.subr.mxu0 0.0
    %752 = vmatpush1.msra.mxu0 0.0
    %753 = vmatprep.subr.mxu0 0.0
    %754 = vmatpush1.msra.mxu0 0.0
    %755 = vmatprep.subr.mxu0 0.0
    %756 = vmatpush1.msra.mxu0 0.0
    %757 = vmatprep.subr.mxu0 0.0
    %758 = vmatpush1.msra.mxu0 0.0
    %759 = vmatprep.subr.mxu0 0.0
    %760 = vmatpush1.msra.mxu0 0.0
    %761 = vmatprep.subr.mxu0 0.0
    %762 = vmatpush1.msra.mxu0 0.0
    %763 = vmatprep.subr.mxu0 0.0
    %764 = vmatpush1.msra.mxu0 0.0
    %765 = vmatprep.subr.mxu0 0.0
    %766 = vmatpush1.msra.mxu0 0.0
    %767 = vmatprep.subr.mxu0 0.0
    %768 = vmatpush1.msra.mxu0 0.0
    %769 = vmatprep.subr.mxu0 0.0
    %770 = vmatpush1.msra.mxu0 0.0
    %771 = vmatprep.subr.mxu0 0.0
    %772 = vmatpush1.msra.mxu0 0.0
    %773 = vmatprep.subr.mxu0 0.0
    %774 = vmatpush1.msra.mxu0 0.0
    %775 = vmatprep.subr.mxu0 0.0
    %776 = vmatpush1.msra.mxu0 0.0
    %777 = vmatprep.subr.mxu0 0.0
    %778 = vmatpush1.msra.mxu0 0.0
    %779 = vmatprep.subr.mxu0 0.0
    %780 = vmatpush1.msra.mxu0 0.0
    %781 = vmatprep.subr.mxu0 0.0
    %782 = vmatpush1.msra.mxu0 0.0
    %783 = vmatprep.subr.mxu0 0.0
    %784 = vmatpush1.msra.mxu0 0.0
    %785 = vmatprep.subr.mxu0 0.0
    %786 = vmatpush1.msra.mxu0 0.0
    %787 = vmatprep.subr.mxu0 0.0
    %788 = vmatpush1.msra.mxu0 0.0
    %789 = vmatprep.subr.mxu0 0.0
    %790 = vmatpush1.msra.mxu0 0.0
    %791 = vmatprep.subr.mxu0 0.0
    %792 = vmatpush1.msra.mxu0 0.0
    %793 = vmatprep.subr.mxu0 0.0
    %794 = vmatpush1.msra.mxu0 0.0
    %795 = vmatprep.subr.mxu0 0.0
    %796 = vmatpush1.msra.mxu0 0.0
    %797 = vmatprep.mubr.f32.mxu0 0.0
    %798 = vmatmul.mubr.f32.gmra.mrb[0].mxu0 %v731
    %v799 = vpop.f32.mrb[0].mxu0
    %v800 = vadd.f32 0.0, %v799
    %v801 = vpop.f32.mrb[0].mxu0
    %802 = vdwg.mxu0
    %v804 = vrot.slane %v800, 2
    %v806 = vadd.f32 %v169, %v804
    %v807 = vtanh.pop %v806
    %808 = vst.msk [vmem:[#allocation2 + $0x8] sm:$0xc0] %vm491, %v807
    %809 = vst.msk [vmem:[#allocation10 - $0x6] sm:$0xc0] %vm491, %v807
    %v810 = vld [vmem:[#allocation7] sm:$0xff]
    %v811 = vld [vmem:[#allocation7 + $0x8] sm:$0xff]
    %v812 = vld [vmem:[#allocation7 + $0x10] sm:$0xff]
    %v813 = vld [vmem:[#allocation7 + $0x18] sm:$0xff]
    %v814 = vld [vmem:[#allocation9] sm:$0xff]
    %v815 = vld [vmem:[#allocation9 + $0x8] sm:$0xff]
    %v816 = vld [vmem:[#allocation9 + $0x10] sm:$0xff]
    %v817 = vld [vmem:[#allocation9 + $0x18] sm:$0xff]
    %v818 = vld [vmem:[%s7] sm:$0x1]
    %v819 = vld [vmem:[#allocation2] sm:$0xff]
    %v820 = vld [vmem:[#allocation2 + $0x8] sm:$0xff]
    %v822 = vlaneseq
    %v823 = vshrl.u32 %v822, 7
    %v824 = vsub.s32 0, %v823
    %v825 = vrot.slane %v818, %v824
    %v828 = vsel %vm173, %v819, 0
    %v831 = vsel %vm173, %v820, 0
    %833 = vmatprep.subr.mxu0 0.0
    %834 = vmatpush1.msra.mxu0 %v810
    %835 = vmatprep.subr.mxu0 0.0
    %836 = vmatpush1.msra.mxu0 %v811
    %837 = vmatprep.subr.mxu0 0.0
    %838 = vmatpush1.msra.mxu0 %v812
    %839 = vmatprep.subr.mxu0 0.0
    %840 = vmatpush1.msra.mxu0 %v813
    %841 = vmatprep.subr.mxu0 0.0
    %842 = vmatpush1.msra.mxu0 0.0
    %843 = vmatprep.subr.mxu0 0.0
    %844 = vmatpush1.msra.mxu0 0.0
    %845 = vmatprep.subr.mxu0 0.0
    %846 = vmatpush1.msra.mxu0 0.0
    %847 = vmatprep.subr.mxu0 0.0
    %848 = vmatpush1.msra.mxu0 0.0
    %849 = vmatprep.subr.mxu0 0.0
    %850 = vmatpush1.msra.mxu0 0.0
    %851 = vmatprep.subr.mxu0 0.0
    %852 = vmatpush1.msra.mxu0 0.0
    %853 = vmatprep.subr.mxu0 0.0
    %854 = vmatpush1.msra.mxu0 0.0
    %855 = vmatprep.subr.mxu0 0.0
    %856 = vmatpush1.msra.mxu0 0.0
    %857 = vmatprep.subr.mxu0 0.0
    %858 = vmatpush1.msra.mxu0 0.0
    %859 = vmatprep.subr.mxu0 0.0
    %860 = vmatpush1.msra.mxu0 0.0
    %861 = vmatprep.subr.mxu0 0.0
    %862 = vmatpush1.msra.mxu0 0.0
    %863 = vmatprep.subr.mxu0 0.0
    %864 = vmatpush1.msra.mxu0 0.0
    %865 = vmatprep.subr.mxu0 0.0
    %866 = vmatpush1.msra.mxu0 0.0
    %867 = vmatprep.subr.mxu0 0.0
    %868 = vmatpush1.msra.mxu0 0.0
    %869 = vmatprep.subr.mxu0 0.0
    %870 = vmatpush1.msra.mxu0 0.0
    %871 = vmatprep.subr.mxu0 0.0
    %872 = vmatpush1.msra.mxu0 0.0
    %873 = vmatprep.subr.mxu0 0.0
    %874 = vmatpush1.msra.mxu0 0.0
    %875 = vmatprep.subr.mxu0 0.0
    %876 = vmatpush1.msra.mxu0 0.0
    %877 = vmatprep.subr.mxu0 0.0
    %878 = vmatpush1.msra.mxu0 0.0
    %879 = vmatprep.subr.mxu0 0.0
    %880 = vmatpush1.msra.mxu0 0.0
    %881 = vmatprep.subr.mxu0 0.0
    %882 = vmatpush1.msra.mxu0 0.0
    %883 = vmatprep.subr.mxu0 0.0
    %884 = vmatpush1.msra.mxu0 0.0
    %885 = vmatprep.subr.mxu0 0.0
    %886 = vmatpush1.msra.mxu0 0.0
    %887 = vmatprep.subr.mxu0 0.0
    %888 = vmatpush1.msra.mxu0 0.0
    %889 = vmatprep.subr.mxu0 0.0
    %890 = vmatpush1.msra.mxu0 0.0
    %891 = vmatprep.subr.mxu0 0.0
    %892 = vmatpush1.msra.mxu0 0.0
    %893 = vmatprep.subr.mxu0 0.0
    %894 = vmatpush1.msra.mxu0 0.0
    %895 = vmatprep.subr.mxu0 0.0
    %896 = vmatpush1.msra.mxu0 0.0
    %897 = vmatprep.mubr.f32.mxu0 0.0
    %898 = vmatmul.mubr.f32.gmra.mrb[0].mxu0 %v828
    %v899 = vpop.f32.mrb[0].mxu0
    %v900 = vadd.f32 %v825, %v899
    %v901 = vpop.f32.mrb[0].mxu0
    %902 = vmatprep.mubr.f32.mxu0 0.0
    %903 = vmatmul.mubr.f32.gmra.mrb[0].mxu0 %v831
    %v904 = vpop.f32.mrb[0].mxu0
    %v905 = vadd.f32 %v825, %v904
    %v906 = vpop.f32.mrb[0].mxu0
    %907 = vdwg.mxu0
    %s908 = scalar_lea.vmem %s1, 2
    %v909 = vld [vmem:[%s908] sm:$0x3]
    %v911 = vsel %vm173, %v909, 0
    %913 = vmatprep.subr.mxu0 0.0
    %914 = vmatpush1.msra.mxu0 %v814
    %915 = vmatprep.subr.mxu0 0.0
    %916 = vmatpush1.msra.mxu0 %v815
    %917 = vmatprep.subr.mxu0 0.0
    %918 = vmatpush1.msra.mxu0 %v816
    %919 = vmatprep.subr.mxu0 0.0
    %920 = vmatpush1.msra.mxu0 %v817
    %921 = vmatprep.subr.mxu0 0.0
    %922 = vmatpush1.msra.mxu0 0.0
    %923 = vmatprep.subr.mxu0 0.0
    %924 = vmatpush1.msra.mxu0 0.0
    %925 = vmatprep.subr.mxu0 0.0
    %926 = vmatpush1.msra.mxu0 0.0
    %927 = vmatprep.subr.mxu0 0.0
    %928 = vmatpush1.msra.mxu0 0.0
    %929 = vmatprep.subr.mxu0 0.0
    %930 = vmatpush1.msra.mxu0 0.0
    %931 = vmatprep.subr.mxu0 0.0
    %932 = vmatpush1.msra.mxu0 0.0
    %933 = vmatprep.subr.mxu0 0.0
    %934 = vmatpush1.msra.mxu0 0.0
    %935 = vmatprep.subr.mxu0 0.0
    %936 = vmatpush1.msra.mxu0 0.0
    %937 = vmatprep.subr.mxu0 0.0
    %938 = vmatpush1.msra.mxu0 0.0
    %939 = vmatprep.subr.mxu0 0.0
    %940 = vmatpush1.msra.mxu0 0.0
    %941 = vmatprep.subr.mxu0 0.0
    %942 = vmatpush1.msra.mxu0 0.0
    %943 = vmatprep.subr.mxu0 0.0
    %944 = vmatpush1.msra.mxu0 0.0
    %945 = vmatprep.subr.mxu0 0.0
    %946 = vmatpush1.msra.mxu0 0.0
    %947 = vmatprep.subr.mxu0 0.0
    %948 = vmatpush1.msra.mxu0 0.0
    %949 = vmatprep.subr.mxu0 0.0
    %950 = vmatpush1.msra.mxu0 0.0
    %951 = vmatprep.subr.mxu0 0.0
    %952 = vmatpush1.msra.mxu0 0.0
    %953 = vmatprep.subr.mxu0 0.0
    %954 = vmatpush1.msra.mxu0 0.0
    %955 = vmatprep.subr.mxu0 0.0
    %956 = vmatpush1.msra.mxu0 0.0
    %957 = vmatprep.subr.mxu0 0.0
    %958 = vmatpush1.msra.mxu0 0.0
    %959 = vmatprep.subr.mxu0 0.0
    %960 = vmatpush1.msra.mxu0 0.0
    %961 = vmatprep.subr.mxu0 0.0
    %962 = vmatpush1.msra.mxu0 0.0
    %963 = vmatprep.subr.mxu0 0.0
    %964 = vmatpush1.msra.mxu0 0.0
    %965 = vmatprep.subr.mxu0 0.0
    %966 = vmatpush1.msra.mxu0 0.0
    %967 = vmatprep.subr.mxu0 0.0
    %968 = vmatpush1.msra.mxu0 0.0
    %969 = vmatprep.subr.mxu0 0.0
    %970 = vmatpush1.msra.mxu0 0.0
    %971 = vmatprep.subr.mxu0 0.0
    %972 = vmatpush1.msra.mxu0 0.0
    %973 = vmatprep.subr.mxu0 0.0
    %974 = vmatpush1.msra.mxu0 0.0
    %975 = vmatprep.subr.mxu0 0.0
    %976 = vmatpush1.msra.mxu0 0.0
    %977 = vmatprep.mubr.f32.mxu0 0.0
    %978 = vmatmul.mubr.f32.gmra.mrb[0].mxu0 %v911
    %v979 = vpop.f32.mrb[0].mxu0
    %v980 = vadd.f32 0.0, %v979
    %v981 = vpop.f32.mrb[0].mxu0
    %982 = vdwg.mxu0
    %v983 = vadd.f32 %v900, %v980
    %v984 = vtanh.pop %v983
    %v985 = vadd.f32 %v984, 0.0
    %v987 = vsel %vm173, %v984, 0
    %989 = vmatprep.subr.mxu0 0.0
    %990 = vmatpush1.msra.mxu0 %v814
    %991 = vmatprep.subr.mxu0 0.0
    %992 = vmatpush1.msra.mxu0 %v815
    %993 = vmatprep.subr.mxu0 0.0
    %994 = vmatpush1.msra.mxu0 %v816
    %995 = vmatprep.subr.mxu0 0.0
    %996 = vmatpush1.msra.mxu0 %v817
    %997 = vmatprep.subr.mxu0 0.0
    %998 = vmatpush1.msra.mxu0 0.0
    %999 = vmatprep.subr.mxu0 0.0
    %1000 = vmatpush1.msra.mxu0 0.0
    %1001 = vmatprep.subr.mxu0 0.0
    %1002 = vmatpush1.msra.mxu0 0.0
    %1003 = vmatprep.subr.mxu0 0.0
    %1004 = vmatpush1.msra.mxu0 0.0
    %1005 = vmatprep.subr.mxu0 0.0
    %1006 = vmatpush1.msra.mxu0 0.0
    %1007 = vmatprep.subr.mxu0 0.0
    %1008 = vmatpush1.msra.mxu0 0.0
    %1009 = vmatprep.subr.mxu0 0.0
    %1010 = vmatpush1.msra.mxu0 0.0
    %1011 = vmatprep.subr.mxu0 0.0
    %1012 = vmatpush1.msra.mxu0 0.0
    %1013 = vmatprep.subr.mxu0 0.0
    %1014 = vmatpush1.msra.mxu0 0.0
    %1015 = vmatprep.subr.mxu0 0.0
    %1016 = vmatpush1.msra.mxu0 0.0
    %1017 = vmatprep.subr.mxu0 0.0
    %1018 = vmatpush1.msra.mxu0 0.0
    %1019 = vmatprep.subr.mxu0 0.0
    %1020 = vmatpush1.msra.mxu0 0.0
    %1021 = vmatprep.subr.mxu0 0.0
    %1022 = vmatpush1.msra.mxu0 0.0
    %1023 = vmatprep.subr.mxu0 0.0
    %1024 = vmatpush1.msra.mxu0 0.0
    %1025 = vmatprep.subr.mxu0 0.0
    %1026 = vmatpush1.msra.mxu0 0.0
    %1027 = vmatprep.subr.mxu0 0.0
    %1028 = vmatpush1.msra.mxu0 0.0
    %1029 = vmatprep.subr.mxu0 0.0
    %1030 = vmatpush1.msra.mxu0 0.0
    %1031 = vmatprep.subr.mxu0 0.0
    %1032 = vmatpush1.msra.mxu0 0.0
    %1033 = vmatprep.subr.mxu0 0.0
    %1034 = vmatpush1.msra.mxu0 0.0
    %1035 = vmatprep.subr.mxu0 0.0
    %1036 = vmatpush1.msra.mxu0 0.0
    %1037 = vmatprep.subr.mxu0 0.0
    %1038 = vmatpush1.msra.mxu0 0.0
    %1039 = vmatprep.subr.mxu0 0.0
    %1040 = vmatpush1.msra.mxu0 0.0
    %1041 = vmatprep.subr.mxu0 0.0
    %1042 = vmatpush1.msra.mxu0 0.0
    %1043 = vmatprep.subr.mxu0 0.0
    %1044 = vmatpush1.msra.mxu0 0.0
    %1045 = vmatprep.subr.mxu0 0.0
    %1046 = vmatpush1.msra.mxu0 0.0
    %1047 = vmatprep.subr.mxu0 0.0
    %1048 = vmatpush1.msra.mxu0 0.0
    %1049 = vmatprep.subr.mxu0 0.0
    %1050 = vmatpush1.msra.mxu0 0.0
    %1051 = vmatprep.subr.mxu0 0.0
    %1052 = vmatpush1.msra.mxu0 0.0
    %1053 = vmatprep.mubr.f32.mxu0 0.0
    %1054 = vmatmul.mubr.f32.gmra.mrb[0].mxu0 %v987
    %v1055 = vpop.f32.mrb[0].mxu0
    %v1056 = vadd.f32 0.0, %v1055
    %v1057 = vpop.f32.mrb[0].mxu0
    %1058 = vdwg.mxu0
    %v1060 = vrot.slane %v1056, 6
    %v1062 = vadd.f32 %v900, %v1060
    %v1063 = vtanh.pop %v1062
    %v1065 = vrot.slane %v1063, 2
    %v1067 = vadd.f32 %v985, %v1065
    %v1068 = vsel %vm173, %v1065, 0
    %1070 = vmatprep.subr.mxu0 0.0
    %1071 = vmatpush1.msra.mxu0 %v814
    %1072 = vmatprep.subr.mxu0 0.0
    %1073 = vmatpush1.msra.mxu0 %v815
    %1074 = vmatprep.subr.mxu0 0.0
    %1075 = vmatpush1.msra.mxu0 %v816
    %1076 = vmatprep.subr.mxu0 0.0
    %1077 = vmatpush1.msra.mxu0 %v817
    %1078 = vmatprep.subr.mxu0 0.0
    %1079 = vmatpush1.msra.mxu0 0.0
    %1080 = vmatprep.subr.mxu0 0.0
    %1081 = vmatpush1.msra.mxu0 0.0
    %1082 = vmatprep.subr.mxu0 0.0
    %1083 = vmatpush1.msra.mxu0 0.0
    %1084 = vmatprep.subr.mxu0 0.0
    %1085 = vmatpush1.msra.mxu0 0.0
    %1086 = vmatprep.subr.mxu0 0.0
    %1087 = vmatpush1.msra.mxu0 0.0
    %1088 = vmatprep.subr.mxu0 0.0
    %1089 = vmatpush1.msra.mxu0 0.0
    %1090 = vmatprep.subr.mxu0 0.0
    %1091 = vmatpush1.msra.mxu0 0.0
    %1092 = vmatprep.subr.mxu0 0.0
    %1093 = vmatpush1.msra.mxu0 0.0
    %1094 = vmatprep.subr.mxu0 0.0
    %1095 = vmatpush1.msra.mxu0 0.0
    %1096 = vmatprep.subr.mxu0 0.0
    %1097 = vmatpush1.msra.mxu0 0.0
    %1098 = vmatprep.subr.mxu0 0.0
    %1099 = vmatpush1.msra.mxu0 0.0
    %1100 = vmatprep.subr.mxu0 0.0
    %1101 = vmatpush1.msra.mxu0 0.0
    %1102 = vmatprep.subr.mxu0 0.0
    %1103 = vmatpush1.msra.mxu0 0.0
    %1104 = vmatprep.subr.mxu0 0.0
    %1105 = vmatpush1.msra.mxu0 0.0
    %1106 = vmatprep.subr.mxu0 0.0
    %1107 = vmatpush1.msra.mxu0 0.0
    %1108 = vmatprep.subr.mxu0 0.0
    %1109 = vmatpush1.msra.mxu0 0.0
    %1110 = vmatprep.subr.mxu0 0.0
    %1111 = vmatpush1.msra.mxu0 0.0
    %1112 = vmatprep.subr.mxu0 0.0
    %1113 = vmatpush1.msra.mxu0 0.0
    %1114 = vmatprep.subr.mxu0 0.0
    %1115 = vmatpush1.msra.mxu0 0.0
    %1116 = vmatprep.subr.mxu0 0.0
    %1117 = vmatpush1.msra.mxu0 0.0
    %1118 = vmatprep.subr.mxu0 0.0
    %1119 = vmatpush1.msra.mxu0 0.0
    %1120 = vmatprep.subr.mxu0 0.0
    %1121 = vmatpush1.msra.mxu0 0.0
    %1122 = vmatprep.subr.mxu0 0.0
    %1123 = vmatpush1.msra.mxu0 0.0
    %1124 = vmatprep.subr.mxu0 0.0
    %1125 = vmatpush1.msra.mxu0 0.0
    %1126 = vmatprep.subr.mxu0 0.0
    %1127 = vmatpush1.msra.mxu0 0.0
    %1128 = vmatprep.subr.mxu0 0.0
    %1129 = vmatpush1.msra.mxu0 0.0
    %1130 = vmatprep.subr.mxu0 0.0
    %1131 = vmatpush1.msra.mxu0 0.0
    %1132 = vmatprep.subr.mxu0 0.0
    %1133 = vmatpush1.msra.mxu0 0.0
    %1134 = vmatprep.mubr.f32.mxu0 0.0
    %1135 = vmatmul.mubr.f32.gmra.mrb[0].mxu0 %v1068
    %v1136 = vpop.f32.mrb[0].mxu0
    %v1137 = vadd.f32 0.0, %v1136
    %v1138 = vpop.f32.mrb[0].mxu0
    %1139 = vdwg.mxu0
    %v1141 = vrot.slane %v1137, 4
    %v1143 = vadd.f32 %v900, %v1141
    %v1144 = vtanh.pop %v1143
    %v1146 = vrot.slane %v1144, 4
    %v1148 = vadd.f32 %v1067, %v1146
    %v1149 = vsel %vm173, %v1146, 0
    %1151 = vmatprep.subr.mxu0 0.0
    %1152 = vmatpush1.msra.mxu0 %v814
    %1153 = vmatprep.subr.mxu0 0.0
    %1154 = vmatpush1.msra.mxu0 %v815
    %1155 = vmatprep.subr.mxu0 0.0
    %1156 = vmatpush1.msra.mxu0 %v816
    %1157 = vmatprep.subr.mxu0 0.0
    %1158 = vmatpush1.msra.mxu0 %v817
    %1159 = vmatprep.subr.mxu0 0.0
    %1160 = vmatpush1.msra.mxu0 0.0
    %1161 = vmatprep.subr.mxu0 0.0
    %1162 = vmatpush1.msra.mxu0 0.0
    %1163 = vmatprep.subr.mxu0 0.0
    %1164 = vmatpush1.msra.mxu0 0.0
    %1165 = vmatprep.subr.mxu0 0.0
    %1166 = vmatpush1.msra.mxu0 0.0
    %1167 = vmatprep.subr.mxu0 0.0
    %1168 = vmatpush1.msra.mxu0 0.0
    %1169 = vmatprep.subr.mxu0 0.0
    %1170 = vmatpush1.msra.mxu0 0.0
    %1171 = vmatprep.subr.mxu0 0.0
    %1172 = vmatpush1.msra.mxu0 0.0
    %1173 = vmatprep.subr.mxu0 0.0
    %1174 = vmatpush1.msra.mxu0 0.0
    %1175 = vmatprep.subr.mxu0 0.0
    %1176 = vmatpush1.msra.mxu0 0.0
    %1177 = vmatprep.subr.mxu0 0.0
    %1178 = vmatpush1.msra.mxu0 0.0
    %1179 = vmatprep.subr.mxu0 0.0
    %1180 = vmatpush1.msra.mxu0 0.0
    %1181 = vmatprep.subr.mxu0 0.0
    %1182 = vmatpush1.msra.mxu0 0.0
    %1183 = vmatprep.subr.mxu0 0.0
    %1184 = vmatpush1.msra.mxu0 0.0
    %1185 = vmatprep.subr.mxu0 0.0
    %1186 = vmatpush1.msra.mxu0 0.0
    %1187 = vmatprep.subr.mxu0 0.0
    %1188 = vmatpush1.msra.mxu0 0.0
    %1189 = vmatprep.subr.mxu0 0.0
    %1190 = vmatpush1.msra.mxu0 0.0
    %1191 = vmatprep.subr.mxu0 0.0
    %1192 = vmatpush1.msra.mxu0 0.0
    %1193 = vmatprep.subr.mxu0 0.0
    %1194 = vmatpush1.msra.mxu0 0.0
    %1195 = vmatprep.subr.mxu0 0.0
    %1196 = vmatpush1.msra.mxu0 0.0
    %1197 = vmatprep.subr.mxu0 0.0
    %1198 = vmatpush1.msra.mxu0 0.0
    %1199 = vmatprep.subr.mxu0 0.0
    %1200 = vmatpush1.msra.mxu0 0.0
    %1201 = vmatprep.subr.mxu0 0.0
    %1202 = vmatpush1.msra.mxu0 0.0
    %1203 = vmatprep.subr.mxu0 0.0
    %1204 = vmatpush1.msra.mxu0 0.0
    %1205 = vmatprep.subr.mxu0 0.0
    %1206 = vmatpush1.msra.mxu0 0.0
    %1207 = vmatprep.subr.mxu0 0.0
    %1208 = vmatpush1.msra.mxu0 0.0
    %1209 = vmatprep.subr.mxu0 0.0
    %1210 = vmatpush1.msra.mxu0 0.0
    %1211 = vmatprep.subr.mxu0 0.0
    %1212 = vmatpush1.msra.mxu0 0.0
    %1213 = vmatprep.subr.mxu0 0.0
    %1214 = vmatpush1.msra.mxu0 0.0
    %1215 = vmatprep.mubr.f32.mxu0 0.0
    %1216 = vmatmul.mubr.f32.gmra.mrb[0].mxu0 %v1149
    %v1217 = vpop.f32.mrb[0].mxu0
    %v1218 = vadd.f32 0.0, %v1217
    %v1219 = vpop.f32.mrb[0].mxu0
    %1220 = vdwg.mxu0
    %v1222 = vrot.slane %v1218, 2
    %v1224 = vadd.f32 %v900, %v1222
    %v1225 = vtanh.pop %v1224
    %v1227 = vrot.slane %v1225, 6
    %v1229 = vadd.f32 %v1148, %v1227
    %v1230 = vsel %vm173, %v1227, 0
    %1232 = vmatprep.subr.mxu0 0.0
    %1233 = vmatpush1.msra.mxu0 %v814
    %1234 = vmatprep.subr.mxu0 0.0
    %1235 = vmatpush1.msra.mxu0 %v815
    %1236 = vmatprep.subr.mxu0 0.0
    %1237 = vmatpush1.msra.mxu0 %v816
    %1238 = vmatprep.subr.mxu0 0.0
    %1239 = vmatpush1.msra.mxu0 %v817
    %1240 = vmatprep.subr.mxu0 0.0
    %1241 = vmatpush1.msra.mxu0 0.0
    %1242 = vmatprep.subr.mxu0 0.0
    %1243 = vmatpush1.msra.mxu0 0.0
    %1244 = vmatprep.subr.mxu0 0.0
    %1245 = vmatpush1.msra.mxu0 0.0
    %1246 = vmatprep.subr.mxu0 0.0
    %1247 = vmatpush1.msra.mxu0 0.0
    %1248 = vmatprep.subr.mxu0 0.0
    %1249 = vmatpush1.msra.mxu0 0.0
    %1250 = vmatprep.subr.mxu0 0.0
    %1251 = vmatpush1.msra.mxu0 0.0
    %1252 = vmatprep.subr.mxu0 0.0
    %1253 = vmatpush1.msra.mxu0 0.0
    %1254 = vmatprep.subr.mxu0 0.0
    %1255 = vmatpush1.msra.mxu0 0.0
    %1256 = vmatprep.subr.mxu0 0.0
    %1257 = vmatpush1.msra.mxu0 0.0
    %1258 = vmatprep.subr.mxu0 0.0
    %1259 = vmatpush1.msra.mxu0 0.0
    %1260 = vmatprep.subr.mxu0 0.0
    %1261 = vmatpush1.msra.mxu0 0.0
    %1262 = vmatprep.subr.mxu0 0.0
    %1263 = vmatpush1.msra.mxu0 0.0
    %1264 = vmatprep.subr.mxu0 0.0
    %1265 = vmatpush1.msra.mxu0 0.0
    %1266 = vmatprep.subr.mxu0 0.0
    %1267 = vmatpush1.msra.mxu0 0.0
    %1268 = vmatprep.subr.mxu0 0.0
    %1269 = vmatpush1.msra.mxu0 0.0
    %1270 = vmatprep.subr.mxu0 0.0
    %1271 = vmatpush1.msra.mxu0 0.0
    %1272 = vmatprep.subr.mxu0 0.0
    %1273 = vmatpush1.msra.mxu0 0.0
    %1274 = vmatprep.subr.mxu0 0.0
    %1275 = vmatpush1.msra.mxu0 0.0
    %1276 = vmatprep.subr.mxu0 0.0
    %1277 = vmatpush1.msra.mxu0 0.0
    %1278 = vmatprep.subr.mxu0 0.0
    %1279 = vmatpush1.msra.mxu0 0.0
    %1280 = vmatprep.subr.mxu0 0.0
    %1281 = vmatpush1.msra.mxu0 0.0
    %1282 = vmatprep.subr.mxu0 0.0
    %1283 = vmatpush1.msra.mxu0 0.0
    %1284 = vmatprep.subr.mxu0 0.0
    %1285 = vmatpush1.msra.mxu0 0.0
    %1286 = vmatprep.subr.mxu0 0.0
    %1287 = vmatpush1.msra.mxu0 0.0
    %1288 = vmatprep.subr.mxu0 0.0
    %1289 = vmatpush1.msra.mxu0 0.0
    %1290 = vmatprep.subr.mxu0 0.0
    %1291 = vmatpush1.msra.mxu0 0.0
    %1292 = vmatprep.subr.mxu0 0.0
    %1293 = vmatpush1.msra.mxu0 0.0
    %1294 = vmatprep.subr.mxu0 0.0
    %1295 = vmatpush1.msra.mxu0 0.0
    %1296 = vmatprep.mubr.f32.mxu0 0.0
    %1297 = vmatmul.mubr.f32.gmra.mrb[0].mxu0 %v1230
    %v1298 = vpop.f32.mrb[0].mxu0
    %v1299 = vadd.f32 0.0, %v1298
    %v1300 = vpop.f32.mrb[0].mxu0
    %1301 = vdwg.mxu0
    %v1302 = vadd.f32 %v905, %v1299
    %v1303 = vtanh.pop %v1302
    %v1304 = vadd.f32 %v1229, %v1303
    %v1306 = vsel %vm173, %v1303, 0
    %1308 = vmatprep.subr.mxu0 0.0
    %1309 = vmatpush1.msra.mxu0 %v814
    %1310 = vmatprep.subr.mxu0 0.0
    %1311 = vmatpush1.msra.mxu0 %v815
    %1312 = vmatprep.subr.mxu0 0.0
    %1313 = vmatpush1.msra.mxu0 %v816
    %1314 = vmatprep.subr.mxu0 0.0
    %1315 = vmatpush1.msra.mxu0 %v817
    %1316 = vmatprep.subr.mxu0 0.0
    %1317 = vmatpush1.msra.mxu0 0.0
    %1318 = vmatprep.subr.mxu0 0.0
    %1319 = vmatpush1.msra.mxu0 0.0
    %1320 = vmatprep.subr.mxu0 0.0
    %1321 = vmatpush1.msra.mxu0 0.0
    %1322 = vmatprep.subr.mxu0 0.0
    %1323 = vmatpush1.msra.mxu0 0.0
    %1324 = vmatprep.subr.mxu0 0.0
    %1325 = vmatpush1.msra.mxu0 0.0
    %1326 = vmatprep.subr.mxu0 0.0
    %1327 = vmatpush1.msra.mxu0 0.0
    %1328 = vmatprep.subr.mxu0 0.0
    %1329 = vmatpush1.msra.mxu0 0.0
    %1330 = vmatprep.subr.mxu0 0.0
    %1331 = vmatpush1.msra.mxu0 0.0
    %1332 = vmatprep.subr.mxu0 0.0
    %1333 = vmatpush1.msra.mxu0 0.0
    %1334 = vmatprep.subr.mxu0 0.0
    %1335 = vmatpush1.msra.mxu0 0.0
    %1336 = vmatprep.subr.mxu0 0.0
    %1337 = vmatpush1.msra.mxu0 0.0
    %1338 = vmatprep.subr.mxu0 0.0
    %1339 = vmatpush1.msra.mxu0 0.0
    %1340 = vmatprep.subr.mxu0 0.0
    %1341 = vmatpush1.msra.mxu0 0.0
    %1342 = vmatprep.subr.mxu0 0.0
    %1343 = vmatpush1.msra.mxu0 0.0
    %1344 = vmatprep.subr.mxu0 0.0
    %1345 = vmatpush1.msra.mxu0 0.0
    %1346 = vmatprep.subr.mxu0 0.0
    %1347 = vmatpush1.msra.mxu0 0.0
    %1348 = vmatprep.subr.mxu0 0.0
    %1349 = vmatpush1.msra.mxu0 0.0
    %1350 = vmatprep.subr.mxu0 0.0
    %1351 = vmatpush1.msra.mxu0 0.0
    %1352 = vmatprep.subr.mxu0 0.0
    %1353 = vmatpush1.msra.mxu0 0.0
    %1354 = vmatprep.subr.mxu0 0.0
    %1355 = vmatpush1.msra.mxu0 0.0
    %1356 = vmatprep.subr.mxu0 0.0
    %1357 = vmatpush1.msra.mxu0 0.0
    %1358 = vmatprep.subr.mxu0 0.0
    %1359 = vmatpush1.msra.mxu0 0.0
    %1360 = vmatprep.subr.mxu0 0.0
    %1361 = vmatpush1.msra.mxu0 0.0
    %1362 = vmatprep.subr.mxu0 0.0
    %1363 = vmatpush1.msra.mxu0 0.0
    %1364 = vmatprep.subr.mxu0 0.0
    %1365 = vmatpush1.msra.mxu0 0.0
    %1366 = vmatprep.subr.mxu0 0.0
    %1367 = vmatpush1.msra.mxu0 0.0
    %1368 = vmatprep.subr.mxu0 0.0
    %1369 = vmatpush1.msra.mxu0 0.0
    %1370 = vmatprep.subr.mxu0 0.0
    %1371 = vmatpush1.msra.mxu0 0.0
    %1372 = vmatprep.mubr.f32.mxu0 0.0
    %1373 = vmatmul.mubr.f32.gmra.mrb[0].mxu0 %v1306
    %v1374 = vpop.f32.mrb[0].mxu0
    %v1375 = vadd.f32 0.0, %v1374
    %v1376 = vpop.f32.mrb[0].mxu0
    %1377 = vdwg.mxu0
    %v1379 = vrot.slane %v1375, 6
    %v1381 = vadd.f32 %v905, %v1379
    %v1382 = vtanh.pop %v1381
    %v1384 = vrot.slane %v1382, 2
    %v1386 = vadd.f32 %v1304, %v1384
    %v1387 = vsel %vm173, %v1384, 0
    %1389 = vmatprep.subr.mxu0 0.0
    %1390 = vmatpush1.msra.mxu0 %v814
    %1391 = vmatprep.subr.mxu0 0.0
    %1392 = vmatpush1.msra.mxu0 %v815
    %1393 = vmatprep.subr.mxu0 0.0
    %1394 = vmatpush1.msra.mxu0 %v816
    %1395 = vmatprep.subr.mxu0 0.0
    %1396 = vmatpush1.msra.mxu0 %v817
    %1397 = vmatprep.subr.mxu0 0.0
    %1398 = vmatpush1.msra.mxu0 0.0
    %1399 = vmatprep.subr.mxu0 0.0
    %1400 = vmatpush1.msra.mxu0 0.0
    %1401 = vmatprep.subr.mxu0 0.0
    %1402 = vmatpush1.msra.mxu0 0.0
    %1403 = vmatprep.subr.mxu0 0.0
    %1404 = vmatpush1.msra.mxu0 0.0
    %1405 = vmatprep.subr.mxu0 0.0
    %1406 = vmatpush1.msra.mxu0 0.0
    %1407 = vmatprep.subr.mxu0 0.0
    %1408 = vmatpush1.msra.mxu0 0.0
    %1409 = vmatprep.subr.mxu0 0.0
    %1410 = vmatpush1.msra.mxu0 0.0
    %1411 = vmatprep.subr.mxu0 0.0
    %1412 = vmatpush1.msra.mxu0 0.0
    %1413 = vmatprep.subr.mxu0 0.0
    %1414 = vmatpush1.msra.mxu0 0.0
    %1415 = vmatprep.subr.mxu0 0.0
    %1416 = vmatpush1.msra.mxu0 0.0
    %1417 = vmatprep.subr.mxu0 0.0
    %1418 = vmatpush1.msra.mxu0 0.0
    %1419 = vmatprep.subr.mxu0 0.0
    %1420 = vmatpush1.msra.mxu0 0.0
    %1421 = vmatprep.subr.mxu0 0.0
    %1422 = vmatpush1.msra.mxu0 0.0
    %1423 = vmatprep.subr.mxu0 0.0
    %1424 = vmatpush1.msra.mxu0 0.0
    %1425 = vmatprep.subr.mxu0 0.0
    %1426 = vmatpush1.msra.mxu0 0.0
    %1427 = vmatprep.subr.mxu0 0.0
    %1428 = vmatpush1.msra.mxu0 0.0
    %1429 = vmatprep.subr.mxu0 0.0
    %1430 = vmatpush1.msra.mxu0 0.0
    %1431 = vmatprep.subr.mxu0 0.0
    %1432 = vmatpush1.msra.mxu0 0.0
    %1433 = vmatprep.subr.mxu0 0.0
    %1434 = vmatpush1.msra.mxu0 0.0
    %1435 = vmatprep.subr.mxu0 0.0
    %1436 = vmatpush1.msra.mxu0 0.0
    %1437 = vmatprep.subr.mxu0 0.0
    %1438 = vmatpush1.msra.mxu0 0.0
    %1439 = vmatprep.subr.mxu0 0.0
    %1440 = vmatpush1.msra.mxu0 0.0
    %1441 = vmatprep.subr.mxu0 0.0
    %1442 = vmatpush1.msra.mxu0 0.0
    %1443 = vmatprep.subr.mxu0 0.0
    %1444 = vmatpush1.msra.mxu0 0.0
    %1445 = vmatprep.subr.mxu0 0.0
    %1446 = vmatpush1.msra.mxu0 0.0
    %1447 = vmatprep.subr.mxu0 0.0
    %1448 = vmatpush1.msra.mxu0 0.0
    %1449 = vmatprep.subr.mxu0 0.0
    %1450 = vmatpush1.msra.mxu0 0.0
    %1451 = vmatprep.subr.mxu0 0.0
    %1452 = vmatpush1.msra.mxu0 0.0
    %1453 = vmatprep.mubr.f32.mxu0 0.0
    %1454 = vmatmul.mubr.f32.gmra.mrb[0].mxu0 %v1387
    %v1455 = vpop.f32.mrb[0].mxu0
    %v1456 = vadd.f32 0.0, %v1455
    %v1457 = vpop.f32.mrb[0].mxu0
    %1458 = vdwg.mxu0
    %v1460 = vrot.slane %v1456, 4
    %v1462 = vadd.f32 %v905, %v1460
    %v1463 = vtanh.pop %v1462
    %v1465 = vrot.slane %v1463, 4
    %v1467 = vadd.f32 %v1386, %v1465
    %v1468 = vsel %vm173, %v1465, 0
    %1470 = vmatprep.subr.mxu0 0.0
    %1471 = vmatpush1.msra.mxu0 %v814
    %1472 = vmatprep.subr.mxu0 0.0
    %1473 = vmatpush1.msra.mxu0 %v815
    %1474 = vmatprep.subr.mxu0 0.0
    %1475 = vmatpush1.msra.mxu0 %v816
    %1476 = vmatprep.subr.mxu0 0.0
    %1477 = vmatpush1.msra.mxu0 %v817
    %1478 = vmatprep.subr.mxu0 0.0
    %1479 = vmatpush1.msra.mxu0 0.0
    %1480 = vmatprep.subr.mxu0 0.0
    %1481 = vmatpush1.msra.mxu0 0.0
    %1482 = vmatprep.subr.mxu0 0.0
    %1483 = vmatpush1.msra.mxu0 0.0
    %1484 = vmatprep.subr.mxu0 0.0
    %1485 = vmatpush1.msra.mxu0 0.0
    %1486 = vmatprep.subr.mxu0 0.0
    %1487 = vmatpush1.msra.mxu0 0.0
    %1488 = vmatprep.subr.mxu0 0.0
    %1489 = vmatpush1.msra.mxu0 0.0
    %1490 = vmatprep.subr.mxu0 0.0
    %1491 = vmatpush1.msra.mxu0 0.0
    %1492 = vmatprep.subr.mxu0 0.0
    %1493 = vmatpush1.msra.mxu0 0.0
    %1494 = vmatprep.subr.mxu0 0.0
    %1495 = vmatpush1.msra.mxu0 0.0
    %1496 = vmatprep.subr.mxu0 0.0
    %1497 = vmatpush1.msra.mxu0 0.0
    %1498 = vmatprep.subr.mxu0 0.0
    %1499 = vmatpush1.msra.mxu0 0.0
    %1500 = vmatprep.subr.mxu0 0.0
    %1501 = vmatpush1.msra.mxu0 0.0
    %1502 = vmatprep.subr.mxu0 0.0
    %1503 = vmatpush1.msra.mxu0 0.0
    %1504 = vmatprep.subr.mxu0 0.0
    %1505 = vmatpush1.msra.mxu0 0.0
    %1506 = vmatprep.subr.mxu0 0.0
    %1507 = vmatpush1.msra.mxu0 0.0
    %1508 = vmatprep.subr.mxu0 0.0
    %1509 = vmatpush1.msra.mxu0 0.0
    %1510 = vmatprep.subr.mxu0 0.0
    %1511 = vmatpush1.msra.mxu0 0.0
    %1512 = vmatprep.subr.mxu0 0.0
    %1513 = vmatpush1.msra.mxu0 0.0
    %1514 = vmatprep.subr.mxu0 0.0
    %1515 = vmatpush1.msra.mxu0 0.0
    %1516 = vmatprep.subr.mxu0 0.0
    %1517 = vmatpush1.msra.mxu0 0.0
    %1518 = vmatprep.subr.mxu0 0.0
    %1519 = vmatpush1.msra.mxu0 0.0
    %1520 = vmatprep.subr.mxu0 0.0
    %1521 = vmatpush1.msra.mxu0 0.0
    %1522 = vmatprep.subr.mxu0 0.0
    %1523 = vmatpush1.msra.mxu0 0.0
    %1524 = vmatprep.subr.mxu0 0.0
    %1525 = vmatpush1.msra.mxu0 0.0
    %1526 = vmatprep.subr.mxu0 0.0
    %1527 = vmatpush1.msra.mxu0 0.0
    %1528 = vmatprep.subr.mxu0 0.0
    %1529 = vmatpush1.msra.mxu0 0.0
    %1530 = vmatprep.subr.mxu0 0.0
    %1531 = vmatpush1.msra.mxu0 0.0
    %1532 = vmatprep.subr.mxu0 0.0
    %1533 = vmatpush1.msra.mxu0 0.0
    %1534 = vmatprep.mubr.f32.mxu0 0.0
    %1535 = vmatmul.mubr.f32.gmra.mrb[0].mxu0 %v1468
    %v1536 = vpop.f32.mrb[0].mxu0
    %v1537 = vadd.f32 0.0, %v1536
    %v1538 = vpop.f32.mrb[0].mxu0
    %1539 = vdwg.mxu0
    %v1541 = vrot.slane %v1537, 2
    %v1543 = vadd.f32 %v905, %v1541
    %v1544 = vtanh.pop %v1543
    %v1546 = vrot.slane %v1544, 6
    %v1548 = vadd.f32 %v1467, %v1546
    %s1549 = scalar_lea.vmem [#allocation10], 2
    %1550 = vst.msk [vmem:[%s1549 - $0x6] sm:$0xc0] %vm491, %v1544
    %v1551 = vsel %vm249, %v1548, 0.0
    %1552 = vadd.xlane.f32.xlu0 %v1551
    %v1553 = vpop.xlane.xlu0 %1552
    %v1554 = vrot.slane %v1553, 4
    %v1555 = vadd.f32 %v1553, %v1554
    %v1556 = vrot.slane %v1555, 2
    %v1557 = vadd.f32 %v1555, %v1556
    %v1558 = vrot.slane %v1557, 1
    %v1559 = vadd.f32 %v1557, %v1558
    %s1560 = vtos %v1559
    %v1561 = vrcp.pop 512.0
    %s1562 = vtos %v1561
    %s1563 = smul.f32 %s1560, %s1562
    %s1564 = scalar_lea.smem [#allocation11], 0
    %1565 = sst [smem:[%s1564]] %s1563
    // Predicated region
    $region46: #{test_rnn_forward.1} parent=1 // pred_check
      _
    $region47: #{test_rnn_forward.1} parent=1 // pred_check_branch
      %1567 = sbr.rel (0) target = $region49
    $region48: #{test_rnn_forward.1} parent=1 // pred_region
      %s1569 = ssub.s32 64, 64
      %1570 = vsyncadd [#allocation5], %s1569
      %s1571 = sshll.u32 [#allocation10], 4
      %s1572 = int_to_ptr.vmem [resolvable:$true] %s1571
      %1577 = dma.vmem_to_hbm [thread:$0]  %s1572, 64, %s8, [#allocation5], 32, 32, 2
    $region49: #{test_rnn_forward.1} parent=1 // pred_fallthru
      _
    // Predicated region
    $region50: #{test_rnn_forward.1} parent=1 // pred_check
      _
    $region51: #{test_rnn_forward.1} parent=1 // pred_check_branch
      %1579 = sbr.rel (0) target = $region53
    $region52: #{test_rnn_forward.1} parent=1 // pred_region
      %s1581 = ssub.s32 16, 16
      %1582 = vsyncadd [#allocation6], %s1581
      %1585 = dma.smem_to_hbm [#allocation11], 16, %s9, [#allocation6]
    $region53: #{test_rnn_forward.1} parent=1 // pred_fallthru
      _
    // Predicated region
    $region54: #{test_rnn_forward.1} parent=1 // pred_check
      _
    $region55: #{test_rnn_forward.1} parent=1 // pred_check_branch
      %1587 = sbr.rel (0) target = $region57
    $region56: #{test_rnn_forward.1} parent=1 // pred_region
      %1588 = dma.done [#allocation5], 64
    $region57: #{test_rnn_forward.1} parent=1 // pred_fallthru
      _
    // Predicated region
    $region58: #{test_rnn_forward.1} parent=1 // pred_check
      _
    $region59: #{test_rnn_forward.1} parent=1 // pred_check_branch
      %1590 = sbr.rel (0) target = $region61
    $region60: #{test_rnn_forward.1} parent=1 // pred_region
      %1591 = dma.done [#allocation6], 16
    $region61: #{test_rnn_forward.1} parent=1 // pred_fallthru
      _
    %1592 = sfence
    %1593 = vsyncpa [#allocation4], 1
    %1594 = vsyncpa [#allocation8], 1
    %1595 = vsyncpa [#allocation5], 1
    %1596 = vsyncpa [#allocation6], 1

</llo_original>
